<compile_context>
chip_gen: v7x
topology: tpu7x:2x2x1
jax: 0.10.0
libtpu: 0.0.40
codegen_flags: <defaults>
</compile_context>

<pallas_src>
import math

import numpy as np
import jax
import jax.numpy as jnp
from jax.experimental import pallas as pl
from jax.experimental.pallas import tpu as pltpu

WINDOW_SIZE = 11
SIGMA = 1.5
C1 = 0.01 ** 2
C2 = 0.03 ** 2


def _gaussian_1d(window_size, sigma):
    # Deterministic "parameter" init, matching gaussian() in the PyTorch module.
    g = np.array(
        [math.exp(-((x - window_size // 2) ** 2) / float(2 * sigma ** 2))
         for x in range(window_size)],
        dtype=np.float64,
    )
    g = g / g.sum()
    return g.astype(np.float32)


def _band_matrix(n, g1d, pad):
    # A[i, j] = g[j - i + pad] for taps landing inside the image; missing taps
    # correspond to the zero padding of "same" conv (folded in).
    K = g1d.shape[0]
    m = np.zeros((n, n), dtype=np.float32)
    for i in range(n):
        for t in range(K):
            j = i + t - pad
            if 0 <= j < n:
                m[i, j] += g1d[t]
    return m


def _block_diag(block, reps):
    n = block.shape[0]
    m = np.zeros((n * reps, n * reps), dtype=np.float32)
    for r in range(reps):
        m[r * n:(r + 1) * n, r * n:(r + 1) * n] = block
    return m


def _make_ssim_kernel(H, PW):
    def kernel(av_ref, bh_ref, img1_ref, img2_ref, out_ref):
        hi = jax.lax.Precision.HIGHEST
        x1 = img1_ref[...]            # (H, PW) f32, P planes packed along lanes
        x2 = img2_ref[...]

        # Five quantities stacked along sublanes -> (5H, PW).
        # (H is a multiple of 8 in the test shape, so the stack / later slices
        #  stay sublane-tile aligned; other H still lowers correctly.)
        q = jnp.concatenate([x1, x2, x1 * x1, x2 * x2, x1 * x2], axis=0)

        # Horizontal (lane-axis) Gaussian pass for all 5 quantities and all P
        # packed planes at once: one MXU matmul with the block-diag band.
        h = jnp.dot(q, bh_ref[...],
                    preferred_element_type=jnp.float32, precision=hi)

        # Vertical (sublane-axis) pass, all 5 quantities fused via the
        # block-diagonal (5H, 5H) Av: one MXU matmul instead of 5.
        f = jnp.dot(av_ref[...], h,
                    preferred_element_type=jnp.float32, precision=hi)

        mu1 = f[0 * H:1 * H, :]
        mu2 = f[1 * H:2 * H, :]
        e11 = f[2 * H:3 * H, :]
        e22 = f[3 * H:4 * H, :]
        e12 = f[4 * H:5 * H, :]

        mu1_sq = mu1 * mu1
        mu2_sq = mu2 * mu2
        mu1_mu2 = mu1 * mu2
        sigma1_sq = e11 - mu1_sq
        sigma2_sq = e22 - mu2_sq
        sigma12 = e12 - mu1_mu2

        ssim_map = ((2.0 * mu1_mu2 + C1) * (2.0 * sigma12 + C2)) / (
            (mu1_sq + mu2_sq + C1) * (sigma1_sq + sigma2_sq + C2)
        )

        # Partial sum over the whole channel batch of this step, written to a
        # lane-dense (8, 128) tile (value replicated; consumer reads [0, 0]).
        out_ref[...] = jnp.full(out_ref.shape, jnp.sum(ssim_map),
                                dtype=out_ref.dtype)

    return kernel


def ssim(img1, img2, window_size=WINDOW_SIZE, size_average=True):
    assert size_average, "only size_average=True is implemented"
    assert img1.shape == img2.shape
    N, C, H, W = img1.shape
    pad = window_size // 2
    NC = N * C

    # Lane packing: largest divisor P of N*C with P*W <= 128 lanes.
    P = 1
    for d in range(1, NC + 1):
        if NC % d == 0 and d * W <= 128:
            P = d
    G = NC // P
    PW = P * W

    g1d = _gaussian_1d(window_size, SIGMA)
    # Vertical pass: block-diag over the 5 stacked quantities -> (5H, 5H).
    av5 = jnp.asarray(_block_diag(_band_matrix(H, g1d, pad), 5))
    # Horizontal pass: block-diag over the P lane-packed planes -> (PW, PW).
    bhP = jnp.asarray(_block_diag(_band_matrix(W, g1d, pad).T, P))

    def pack(x):
        # (N, C, H, W) -> (G, P, H, W) -> (G, H, P, W) -> (G, H, P*W)
        # Wrapper-side layout plumbing so the kernel sees lane-dense slabs.
        x = x.astype(jnp.float32).reshape(G, P, H, W)
        return jnp.transpose(x, (0, 2, 1, 3)).reshape(G, H, PW)

    x1 = pack(img1)
    x2 = pack(img2)

    kernel = _make_ssim_kernel(H, PW)
    img_spec = pl.BlockSpec((pl.Squeezed(), H, PW), lambda g: (g, 0, 0))

    out = pl.pallas_call(
        kernel,
        out_shape=jax.ShapeDtypeStruct((G, 8, 128), jnp.float32),
        grid=(G,),
        in_specs=[
            # Constant index_map -> filter matrices fetched once and kept
            # VMEM-resident across the whole (flat, parallel) grid.
            pl.BlockSpec((5 * H, 5 * H), lambda g: (0, 0)),
            pl.BlockSpec((PW, PW), lambda g: (0, 0)),
            img_spec,
            img_spec,
        ],
        out_specs=pl.BlockSpec((pl.Squeezed(), 8, 128), lambda g: (g, 0, 0)),
        compiler_params=pltpu.CompilerParams(
            dimension_semantics=("parallel",),
            vmem_limit_bytes=32 * 1024 * 1024,
        ),
    )(av5, bhP, x1, x2)

    total = float(N * C * H * W)
    return jnp.sum(out[:, 0, 0]) / total


def _ssim_ref(img1, img2, window_size=WINDOW_SIZE):
    # Pure-JAX reference (depthwise conv2d) for a correctness check.
    N, C, H, W = img1.shape
    g = jnp.asarray(_gaussian_1d(window_size, SIGMA))
    w2d = jnp.outer(g, g)
    w = jnp.broadcast_to(w2d, (C, 1, window_size, window_size))
    pad = window_size // 2

    def conv(x):
        return jax.lax.conv_general_dilated(
            x, w, (1, 1), [(pad, pad), (pad, pad)],
            feature_group_count=C,
            dimension_numbers=("NCHW", "OIHW", "NCHW"),
            precision=jax.lax.Precision.HIGHEST)

    mu1, mu2 = conv(img1), conv(img2)
    s11 = conv(img1 * img1) - mu1 * mu1
    s22 = conv(img2 * img2) - mu2 * mu2
    s12 = conv(img1 * img2) - mu1 * mu2
    m = ((2 * mu1 * mu2 + C1) * (2 * s12 + C2)) / (
        (mu1 * mu1 + mu2 * mu2 + C1) * (s11 + s22 + C2))
    return m.mean()


if __name__ == "__main__":
    key = jax.random.PRNGKey(0)
    k1, k2 = jax.random.split(key)
    img1 = jax.random.uniform(k1, (2, 4, 16, 16), dtype=jnp.float32)
    img2 = jax.random.uniform(k2, (2, 4, 16, 16), dtype=jnp.float32)

    val = ssim(img1, img2)
    jax.block_until_ready(val)

    ref = _ssim_ref(img1, img2)
    jax.block_until_ready(ref)
    np.testing.assert_allclose(np.asarray(val), np.asarray(ref),
                               rtol=1e-4, atol=1e-4)

    print("KERNEL_OK")
</pallas_src>

<mosaic_0001>
module attributes {stable_mosaic.version = 11 : i64} {
  func.func @kernel(%arg0: i32, %arg1: memref<80x80xf32, #tpu.memory_space<vmem>>, %arg2: memref<128x128xf32, #tpu.memory_space<vmem>>, %arg3: memref<1x16x128xf32, #tpu.memory_space<vmem>>, %arg4: memref<1x16x128xf32, #tpu.memory_space<vmem>>, %arg5: memref<1x8x128xf32, #tpu.memory_space<vmem>>) attributes {dimension_semantics = [#tpu.dimension_semantics<parallel>], iteration_bounds = array<i64: 1>, scalar_prefetch = 0 : i64, scratch_operands = 0 : i64, tpu.core_type = #tpu.core_type<tc>, window_params = [{pipeline_mode = #tpu.pipeline_mode<synchronous>, transform_indices = @transform_0, window_bounds = array<i64: 80, 80>}, {pipeline_mode = #tpu.pipeline_mode<synchronous>, transform_indices = @transform_1, window_bounds = array<i64: 128, 128>}, {transform_indices = @transform_2, window_bounds = array<i64: 1, 16, 128>}, {transform_indices = @transform_3, window_bounds = array<i64: 1, 16, 128>}, {transform_indices = @transform_4, window_bounds = array<i64: 1, 8, 128>}]} {
    %c0 = arith.constant 0 : index
    %c0_0 = arith.constant 0 : index
    %c0_1 = arith.constant 0 : index
    %0 = vector.load %arg3[%c0, %c0_0, %c0_1] : memref<1x16x128xf32, #tpu.memory_space<vmem>>, vector<1x16x128xf32>
    %1 = vector.shape_cast %0 : vector<1x16x128xf32> to vector<16x128xf32>
    %c0_2 = arith.constant 0 : index
    %c0_3 = arith.constant 0 : index
    %c0_4 = arith.constant 0 : index
    %2 = vector.load %arg4[%c0_2, %c0_3, %c0_4] : memref<1x16x128xf32, #tpu.memory_space<vmem>>, vector<1x16x128xf32>
    %3 = vector.shape_cast %2 : vector<1x16x128xf32> to vector<16x128xf32>
    %4 = arith.mulf %1, %1 : vector<16x128xf32>
    %5 = arith.mulf %3, %3 : vector<16x128xf32>
    %6 = arith.mulf %1, %3 : vector<16x128xf32>
    %7 = tpu.concatenate %1, %3, %4, %5, %6 in 0 : vector<16x128xf32>, vector<16x128xf32>, vector<16x128xf32>, vector<16x128xf32>, vector<16x128xf32> -> vector<80x128xf32>
    %c0_5 = arith.constant 0 : index
    %c0_6 = arith.constant 0 : index
    %8 = vector.load %arg2[%c0_5, %c0_6] : memref<128x128xf32, #tpu.memory_space<vmem>>, vector<128x128xf32>
    %cst = arith.constant dense<0.000000e+00> : vector<80x128xf32>
    %9 = tpu.matmul %7, %8, %cst {dimension_numbers = #tpu.dot_dimension_numbers<[1], [0], [0], [1], [0, 0, 1, 1], [], []>, precision = #tpu.contract_precision<fp32>} : vector<80x128xf32>, vector<128x128xf32>, vector<80x128xf32> -> vector<80x128xf32>
    %c0_7 = arith.constant 0 : index
    %c0_8 = arith.constant 0 : index
    %10 = vector.load %arg1[%c0_7, %c0_8] : memref<80x80xf32, #tpu.memory_space<vmem>>, vector<80x80xf32>
    %cst_9 = arith.constant dense<0.000000e+00> : vector<80x128xf32>
    %11 = tpu.matmul %10, %9, %cst_9 {dimension_numbers = #tpu.dot_dimension_numbers<[1], [0], [0], [1], [0, 0, 1, 1], [], []>, precision = #tpu.contract_precision<fp32>} : vector<80x80xf32>, vector<80x128xf32>, vector<80x128xf32> -> vector<80x128xf32>
    %12 = vector.extract_strided_slice %11 {offsets = [0, 0], sizes = [16, 128], strides = [1, 1]} : vector<80x128xf32> to vector<16x128xf32>
    %13 = vector.extract_strided_slice %11 {offsets = [16, 0], sizes = [16, 128], strides = [1, 1]} : vector<80x128xf32> to vector<16x128xf32>
    %14 = vector.extract_strided_slice %11 {offsets = [32, 0], sizes = [16, 128], strides = [1, 1]} : vector<80x128xf32> to vector<16x128xf32>
    %15 = vector.extract_strided_slice %11 {offsets = [48, 0], sizes = [16, 128], strides = [1, 1]} : vector<80x128xf32> to vector<16x128xf32>
    %16 = vector.extract_strided_slice %11 {offsets = [64, 0], sizes = [16, 128], strides = [1, 1]} : vector<80x128xf32> to vector<16x128xf32>
    %17 = arith.mulf %12, %12 : vector<16x128xf32>
    %18 = arith.mulf %13, %13 : vector<16x128xf32>
    %19 = arith.mulf %12, %13 : vector<16x128xf32>
    %20 = arith.subf %14, %17 : vector<16x128xf32>
    %21 = arith.subf %15, %18 : vector<16x128xf32>
    %22 = arith.subf %16, %19 : vector<16x128xf32>
    %cst_10 = arith.constant 2.000000e+00 : f32
    %23 = vector.broadcast %cst_10 : f32 to vector<16x128xf32>
    %24 = arith.mulf %23, %19 : vector<16x128xf32>
    %cst_11 = arith.constant 9.99999974E-5 : f32
    %25 = vector.broadcast %cst_11 : f32 to vector<16x128xf32>
    %26 = arith.addf %24, %25 : vector<16x128xf32>
    %cst_12 = arith.constant 2.000000e+00 : f32
    %27 = vector.broadcast %cst_12 : f32 to vector<16x128xf32>
    %28 = arith.mulf %27, %22 : vector<16x128xf32>
    %cst_13 = arith.constant 8.99999984E-4 : f32
    %29 = vector.broadcast %cst_13 : f32 to vector<16x128xf32>
    %30 = arith.addf %28, %29 : vector<16x128xf32>
    %31 = arith.mulf %26, %30 : vector<16x128xf32>
    %32 = arith.addf %17, %18 : vector<16x128xf32>
    %cst_14 = arith.constant 9.99999974E-5 : f32
    %33 = vector.broadcast %cst_14 : f32 to vector<16x128xf32>
    %34 = arith.addf %32, %33 : vector<16x128xf32>
    %35 = arith.addf %20, %21 : vector<16x128xf32>
    %cst_15 = arith.constant 8.99999984E-4 : f32
    %36 = vector.broadcast %cst_15 : f32 to vector<16x128xf32>
    %37 = arith.addf %35, %36 : vector<16x128xf32>
    %38 = arith.mulf %34, %37 : vector<16x128xf32>
    %39 = arith.divf %31, %38 : vector<16x128xf32>
    %40 = vector.shape_cast %39 : vector<16x128xf32> to vector<1x16x128xf32>
    %cst_16 = arith.constant dense<0.000000e+00> : vector<1xf32>
    %41 = vector.multi_reduction <add>, %40, %cst_16 [1, 2] : vector<1x16x128xf32> to vector<1xf32>
    %42 = vector.shape_cast %41 : vector<1xf32> to vector<1x1x1xf32>
    %43 = vector.extract %42[0, 0, 0] : f32 from vector<1x1x1xf32>
    %44 = vector.broadcast %43 : f32 to vector<8x128xf32>
    %c0_17 = arith.constant 0 : index
    %c0_18 = arith.constant 0 : index
    %c0_19 = arith.constant 0 : index
    %45 = vector.load %arg5[%c0_17, %c0_18, %c0_19] : memref<1x8x128xf32, #tpu.memory_space<vmem>>, vector<1x8x128xf32>
    %46 = vector.shape_cast %45 : vector<1x8x128xf32> to vector<8x128xf32>
    %47 = vector.shape_cast %44 : vector<8x128xf32> to vector<1x8x128xf32>
    tpu.vector_store %arg5[%c0_17, %c0_18, %c0_19], %47 {strides = array<i32>} : memref<1x8x128xf32, #tpu.memory_space<vmem>>, vector<1x8x128xf32>,
    return
  }
  func.func @transform_0(%arg0: i32) -> (i32, i32) {
    %c0_i32 = arith.constant 0 : i32
    %c0_i32_0 = arith.constant 0 : i32
    %c0_i32_1 = arith.constant 0 : i32
    return %c0_i32, %c0_i32_0 : i32, i32
  }
  func.func @transform_1(%arg0: i32) -> (i32, i32) {
    %c0_i32 = arith.constant 0 : i32
    %c0_i32_0 = arith.constant 0 : i32
    %c0_i32_1 = arith.constant 0 : i32
    return %c0_i32, %c0_i32_0 : i32, i32
  }
  func.func @transform_2(%arg0: i32) -> (i32, i32, i32) {
    %c0_i32 = arith.constant 0 : i32
    %c0_i32_0 = arith.constant 0 : i32
    %c0_i32_1 = arith.constant 0 : i32
    return %arg0, %c0_i32, %c0_i32_0 : i32, i32, i32
  }
  func.func @transform_3(%arg0: i32) -> (i32, i32, i32) {
    %c0_i32 = arith.constant 0 : i32
    %c0_i32_0 = arith.constant 0 : i32
    %c0_i32_1 = arith.constant 0 : i32
    return %arg0, %c0_i32, %c0_i32_0 : i32, i32, i32
  }
  func.func @transform_4(%arg0: i32) -> (i32, i32, i32) {
    %c0_i32 = arith.constant 0 : i32
    %c0_i32_0 = arith.constant 0 : i32
    %c0_i32_1 = arith.constant 0 : i32
    return %arg0, %c0_i32, %c0_i32_0 : i32, i32, i32
  }
}

</mosaic_0001>

<llo_original>
// kernel: tpu_custom_call.1
$region0: #{tpu_custom_call.1}
  #allocation0 [shape = 'u32[]', space=smem, size = 0x4, offset = 0x4, fixed_abs, tag = 'smem constant byte address 0x4 - core index']
  #allocation1 [shape = 'u32[144,128]{1,0:T(1,128)}', space=vmem, size = 0x12000, scoped, tag = 'internal scratch']
  %s0 = inlined_call_operand.hbm [shape: f32[80,80], index: 0, kind: input, shape index: {}]
  %s1 = inlined_call_operand.hbm [shape: f32[128,128], index: 1, kind: input, shape index: {}]
  %s2 = inlined_call_operand.hbm [shape: f32[1,16,128], index: 2, kind: input, shape index: {}]
  %s3 = inlined_call_operand.hbm [shape: f32[1,16,128], index: 3, kind: input, shape index: {}]
  %s4 = inlined_call_operand.hbm [shape: f32[1,8,128], index: 4, kind: output, shape index: {}]
  %s5 = sld [smem:[#allocation0]]
  $region42: #{tpu_custom_call.1} parent=0
    _
  %s7 = ssub.s32 1, %s5
  %s8 = scalar_select 0, %s7, %s5
  $region1: #{tpu_custom_call.1} parent=0
    #allocation2 [shape = 'u8[40960]{0}', space=vmem, size = 0xa000, scoped, tag = 'input window, operand 0, single buffered']
    #allocation3 [shape = 's32[1]{0}', space=sflag, size = 0x4, scoped, tag = 'scoped memory for tpu_custom_call.1']
    #allocation4 [shape = 's32[1]{0}', space=sflag, size = 0x4, scoped, tag = 'scoped memory for tpu_custom_call.1']
    #allocation5 [shape = 'u8[65536]{0}', space=vmem, size = 0x10000, scoped, tag = 'input window, operand 1, single buffered']
    #allocation6 [shape = 's32[1]{0}', space=sflag, size = 0x4, scoped, tag = 'scoped memory for tpu_custom_call.1']
    #allocation7 [shape = 'u8[8192]{0}', space=vmem, size = 0x2000, scoped, tag = 'input window, operand 2, single buffered']
    #allocation8 [shape = 'u8[8192]{0}', space=vmem, size = 0x2000, scoped, tag = 'input window, operand 3, single buffered']
    #allocation9 [shape = 's32[1]{0}', space=sflag, size = 0x4, scoped, tag = 'scoped memory for tpu_custom_call.1']
    #allocation10 [shape = 'u8[4096]{0}', space=vmem, size = 0x1000, scoped, tag = 'output window, operand 0, single buffered']
    %9 = vsyncpa [#allocation3], 0
    %10 = vsyncpa [#allocation6], 0
    %11 = vsyncpa [#allocation9], 0
    %12 = vsyncpa [#allocation4], 0
    // Predicated region
    $region2: #{tpu_custom_call.1} parent=1 // pred_check
      _
    $region3: #{tpu_custom_call.1} parent=1 // pred_check_branch
      %14 = sbr.rel (0) target = $region5
    $region4: #{tpu_custom_call.1} parent=1 // pred_region
      %s16 = ssub.s32 1280, 1280
      %17 = vsyncadd [#allocation3], %s16
      %s18 = sshll.u32 [#allocation2], 4
      %s19 = int_to_ptr.vmem [resolvable:$true] %s18
      %24 = dma.hbm_to_vmem [thread:$0]  %s0, 1280, %s19, [#allocation3], 128, 128, 8
    $region5: #{tpu_custom_call.1} parent=1 // pred_fallthru
      _
    // Predicated region
    $region6: #{tpu_custom_call.1} parent=1 // pred_check
      _
    $region7: #{tpu_custom_call.1} parent=1 // pred_check_branch
      %26 = sbr.rel (0) target = $region9
    $region8: #{tpu_custom_call.1} parent=1 // pred_region
      %s28 = ssub.s32 2048, 2048
      %29 = vsyncadd [#allocation6], %s28
      %s30 = sshll.u32 [#allocation5], 4
      %s31 = int_to_ptr.vmem [resolvable:$true] %s30
      %36 = dma.hbm_to_vmem [thread:$0]  %s1, 2048, %s31, [#allocation6], 128, 128, 8
    $region9: #{tpu_custom_call.1} parent=1 // pred_fallthru
      _
    // Predicated region
    $region10: #{tpu_custom_call.1} parent=1 // pred_check
      _
    $region11: #{tpu_custom_call.1} parent=1 // pred_check_branch
      %38 = sbr.rel (0) target = $region13
    $region12: #{tpu_custom_call.1} parent=1 // pred_region
      %s40 = ssub.s32 256, 256
      %41 = vsyncadd [#allocation6], %s40
      %s42 = sshll.u32 [#allocation7], 4
      %s43 = int_to_ptr.vmem [resolvable:$true] %s42
      %48 = dma.hbm_to_vmem [thread:$0]  %s2, 256, %s43, [#allocation6], 128, 128, 8
    $region13: #{tpu_custom_call.1} parent=1 // pred_fallthru
      _
    // Predicated region
    $region14: #{tpu_custom_call.1} parent=1 // pred_check
      _
    $region15: #{tpu_custom_call.1} parent=1 // pred_check_branch
      %50 = sbr.rel (0) target = $region17
    $region16: #{tpu_custom_call.1} parent=1 // pred_region
      %s52 = ssub.s32 256, 256
      %53 = vsyncadd [#allocation9], %s52
      %s54 = sshll.u32 [#allocation8], 4
      %s55 = int_to_ptr.vmem [resolvable:$true] %s54
      %60 = dma.hbm_to_vmem [thread:$0]  %s3, 256, %s55, [#allocation9], 128, 128, 8
    $region17: #{tpu_custom_call.1} parent=1 // pred_fallthru
      _
    // Predicated region
    $region18: #{tpu_custom_call.1} parent=1 // pred_check
      _
    $region19: #{tpu_custom_call.1} parent=1 // pred_check_branch
      %62 = sbr.rel (0) target = $region21
    $region20: #{tpu_custom_call.1} parent=1 // pred_region
      %63 = dma.done [#allocation3], 1280
    $region21: #{tpu_custom_call.1} parent=1 // pred_fallthru
      _
    // Predicated region
    $region22: #{tpu_custom_call.1} parent=1 // pred_check
      _
    $region23: #{tpu_custom_call.1} parent=1 // pred_check_branch
      %65 = sbr.rel (0) target = $region25
    $region24: #{tpu_custom_call.1} parent=1 // pred_region
      %66 = dma.done [#allocation6], 2048
    $region25: #{tpu_custom_call.1} parent=1 // pred_fallthru
      _
    // Predicated region
    $region26: #{tpu_custom_call.1} parent=1 // pred_check
      _
    $region27: #{tpu_custom_call.1} parent=1 // pred_check_branch
      %68 = sbr.rel (0) target = $region29
    $region28: #{tpu_custom_call.1} parent=1 // pred_region
      %69 = dma.done [#allocation6], 256
    $region29: #{tpu_custom_call.1} parent=1 // pred_fallthru
      _
    // Predicated region
    $region30: #{tpu_custom_call.1} parent=1 // pred_check
      _
    $region31: #{tpu_custom_call.1} parent=1 // pred_check_branch
      %71 = sbr.rel (0) target = $region33
    $region32: #{tpu_custom_call.1} parent=1 // pred_region
      %72 = dma.done [#allocation9], 256
    $region33: #{tpu_custom_call.1} parent=1 // pred_fallthru
      _
    %v73 = vld [vmem:[#allocation7] sm:$0xff]
    %v74 = vld [vmem:[#allocation7 + $0x8] sm:$0xff]
    %v75 = vld [vmem:[#allocation8] sm:$0xff]
    %v76 = vld [vmem:[#allocation8 + $0x8] sm:$0xff]
    %v77 = vmul.f32 %v73, %v73
    %v78 = vmul.f32 %v74, %v74
    %v79 = vmul.f32 %v75, %v75
    %v80 = vmul.f32 %v76, %v76
    %v81 = vmul.f32 %v73, %v75
    %v82 = vmul.f32 %v74, %v76
    %v83 = vld [vmem:[#allocation5] sm:$0xff]
    %v84 = vld [vmem:[#allocation5 + $0x8] sm:$0xff]
    %v85 = vld [vmem:[#allocation5 + $0x10] sm:$0xff]
    %v86 = vld [vmem:[#allocation5 + $0x18] sm:$0xff]
    %v87 = vld [vmem:[#allocation5 + $0x20] sm:$0xff]
    %v88 = vld [vmem:[#allocation5 + $0x28] sm:$0xff]
    %v89 = vld [vmem:[#allocation5 + $0x30] sm:$0xff]
    %v90 = vld [vmem:[#allocation5 + $0x38] sm:$0xff]
    %v91 = vld [vmem:[#allocation5 + $0x40] sm:$0xff]
    %v92 = vld [vmem:[#allocation5 + $0x48] sm:$0xff]
    %v93 = vld [vmem:[#allocation5 + $0x50] sm:$0xff]
    %v94 = vld [vmem:[#allocation5 + $0x58] sm:$0xff]
    %v95 = vld [vmem:[#allocation5 + $0x60] sm:$0xff]
    %v96 = vld [vmem:[#allocation5 + $0x68] sm:$0xff]
    %v97 = vld [vmem:[#allocation5 + $0x70] sm:$0xff]
    %v98 = vld [vmem:[#allocation5 + $0x78] sm:$0xff]
    %99 = vmatprep.subr.mxu0 0.0
    %v100 = vand.u32 %v83, 4294901760
    %101 = vmatpush1.msra.mxu0 %v100
    %102 = vmatprep.subr.mxu0 0.0
    %v103 = vand.u32 %v84, 4294901760
    %104 = vmatpush1.msra.mxu0 %v103
    %105 = vmatprep.subr.mxu0 0.0
    %v106 = vand.u32 %v85, 4294901760
    %107 = vmatpush1.msra.mxu0 %v106
    %108 = vmatprep.subr.mxu0 0.0
    %v109 = vand.u32 %v86, 4294901760
    %110 = vmatpush1.msra.mxu0 %v109
    %111 = vmatprep.subr.mxu0 0.0
    %v112 = vand.u32 %v87, 4294901760
    %113 = vmatpush1.msra.mxu0 %v112
    %114 = vmatprep.subr.mxu0 0.0
    %v115 = vand.u32 %v88, 4294901760
    %116 = vmatpush1.msra.mxu0 %v115
    %117 = vmatprep.subr.mxu0 0.0
    %v118 = vand.u32 %v89, 4294901760
    %119 = vmatpush1.msra.mxu0 %v118
    %120 = vmatprep.subr.mxu0 0.0
    %v121 = vand.u32 %v90, 4294901760
    %122 = vmatpush1.msra.mxu0 %v121
    %123 = vmatprep.subr.mxu0 0.0
    %v124 = vand.u32 %v91, 4294901760
    %125 = vmatpush1.msra.mxu0 %v124
    %126 = vmatprep.subr.mxu0 0.0
    %v127 = vand.u32 %v92, 4294901760
    %128 = vmatpush1.msra.mxu0 %v127
    %129 = vmatprep.subr.mxu0 0.0
    %v130 = vand.u32 %v93, 4294901760
    %131 = vmatpush1.msra.mxu0 %v130
    %132 = vmatprep.subr.mxu0 0.0
    %v133 = vand.u32 %v94, 4294901760
    %134 = vmatpush1.msra.mxu0 %v133
    %135 = vmatprep.subr.mxu0 0.0
    %v136 = vand.u32 %v95, 4294901760
    %137 = vmatpush1.msra.mxu0 %v136
    %138 = vmatprep.subr.mxu0 0.0
    %v139 = vand.u32 %v96, 4294901760
    %140 = vmatpush1.msra.mxu0 %v139
    %141 = vmatprep.subr.mxu0 0.0
    %v142 = vand.u32 %v97, 4294901760
    %143 = vmatpush1.msra.mxu0 %v142
    %144 = vmatprep.subr.mxu0 0.0
    %v145 = vand.u32 %v98, 4294901760
    %146 = vmatpush1.msra.mxu0 %v145
    %147 = vmatprep.subr.mxu0 0.0
    %148 = vmatpush1.msra.mxu0 0.0
    %149 = vmatprep.subr.mxu0 0.0
    %150 = vmatpush1.msra.mxu0 0.0
    %151 = vmatprep.subr.mxu0 0.0
    %152 = vmatpush1.msra.mxu0 0.0
    %153 = vmatprep.subr.mxu0 0.0
    %154 = vmatpush1.msra.mxu0 0.0
    %155 = vmatprep.subr.mxu0 0.0
    %156 = vmatpush1.msra.mxu0 0.0
    %157 = vmatprep.subr.mxu0 0.0
    %158 = vmatpush1.msra.mxu0 0.0
    %159 = vmatprep.subr.mxu0 0.0
    %160 = vmatpush1.msra.mxu0 0.0
    %161 = vmatprep.subr.mxu0 0.0
    %162 = vmatpush1.msra.mxu0 0.0
    %163 = vmatprep.subr.mxu0 0.0
    %164 = vmatpush1.msra.mxu0 0.0
    %165 = vmatprep.subr.mxu0 0.0
    %166 = vmatpush1.msra.mxu0 0.0
    %167 = vmatprep.subr.mxu0 0.0
    %168 = vmatpush1.msra.mxu0 0.0
    %169 = vmatprep.subr.mxu0 0.0
    %170 = vmatpush1.msra.mxu0 0.0
    %171 = vmatprep.subr.mxu0 0.0
    %172 = vmatpush1.msra.mxu0 0.0
    %173 = vmatprep.subr.mxu0 0.0
    %174 = vmatpush1.msra.mxu0 0.0
    %175 = vmatprep.subr.mxu0 0.0
    %176 = vmatpush1.msra.mxu0 0.0
    %177 = vmatprep.subr.mxu0 0.0
    %178 = vmatpush1.msra.mxu0 0.0
    %179 = vmatprep.mubr.f32.mxu0 0.0
    %v180 = vand.u32 %v73, 4294901760
    %v181 = vsub.f32 %v73, %v180
    %v182 = vand.u32 %v181, 4294901760
    %v183 = vsub.f32 %v181, %v182
    %v184 = vand.u32 %v183, 4294901760
    %185 = vmatmul.mubr.f32.gmra.mrb[0].mxu0 %v184
    %v186 = vpop.f32.mrb[0].mxu0
    %v187 = vadd.f32 0.0, %v186
    %v188 = vpop.f32.mrb[0].mxu0
    %189 = vmatprep.mubr.f32.mxu0 0.0
    %v190 = vand.u32 %v74, 4294901760
    %v191 = vsub.f32 %v74, %v190
    %v192 = vand.u32 %v191, 4294901760
    %v193 = vsub.f32 %v191, %v192
    %v194 = vand.u32 %v193, 4294901760
    %195 = vmatmul.mubr.f32.gmra.mrb[0].mxu0 %v194
    %v196 = vpop.f32.mrb[0].mxu0
    %v197 = vadd.f32 0.0, %v196
    %v198 = vpop.f32.mrb[0].mxu0
    %199 = vmatprep.mubr.f32.mxu0 0.0
    %v200 = vand.u32 %v75, 4294901760
    %v201 = vsub.f32 %v75, %v200
    %v202 = vand.u32 %v201, 4294901760
    %v203 = vsub.f32 %v201, %v202
    %v204 = vand.u32 %v203, 4294901760
    %205 = vmatmul.mubr.f32.gmra.mrb[0].mxu0 %v204
    %v206 = vpop.f32.mrb[0].mxu0
    %v207 = vadd.f32 0.0, %v206
    %v208 = vpop.f32.mrb[0].mxu0
    %209 = vmatprep.mubr.f32.mxu0 0.0
    %v210 = vand.u32 %v76, 4294901760
    %v211 = vsub.f32 %v76, %v210
    %v212 = vand.u32 %v211, 4294901760
    %v213 = vsub.f32 %v211, %v212
    %v214 = vand.u32 %v213, 4294901760
    %215 = vmatmul.mubr.f32.gmra.mrb[0].mxu0 %v214
    %v216 = vpop.f32.mrb[0].mxu0
    %v217 = vadd.f32 0.0, %v216
    %v218 = vpop.f32.mrb[0].mxu0
    %219 = vmatprep.mubr.f32.mxu0 0.0
    %v220 = vand.u32 %v77, 4294901760
    %v221 = vsub.f32 %v77, %v220
    %v222 = vand.u32 %v221, 4294901760
    %v223 = vsub.f32 %v221, %v222
    %v224 = vand.u32 %v223, 4294901760
    %225 = vmatmul.mubr.f32.gmra.mrb[0].mxu0 %v224
    %v226 = vpop.f32.mrb[0].mxu0
    %v227 = vadd.f32 0.0, %v226
    %v228 = vpop.f32.mrb[0].mxu0
    %229 = vmatprep.mubr.f32.mxu0 0.0
    %v230 = vand.u32 %v78, 4294901760
    %v231 = vsub.f32 %v78, %v230
    %v232 = vand.u32 %v231, 4294901760
    %v233 = vsub.f32 %v231, %v232
    %v234 = vand.u32 %v233, 4294901760
    %235 = vmatmul.mubr.f32.gmra.mrb[0].mxu0 %v234
    %v236 = vpop.f32.mrb[0].mxu0
    %v237 = vadd.f32 0.0, %v236
    %v238 = vpop.f32.mrb[0].mxu0
    %239 = vmatprep.mubr.f32.mxu0 0.0
    %v240 = vand.u32 %v79, 4294901760
    %v241 = vsub.f32 %v79, %v240
    %v242 = vand.u32 %v241, 4294901760
    %v243 = vsub.f32 %v241, %v242
    %v244 = vand.u32 %v243, 4294901760
    %245 = vmatmul.mubr.f32.gmra.mrb[0].mxu0 %v244
    %v246 = vpop.f32.mrb[0].mxu0
    %v247 = vadd.f32 0.0, %v246
    %v248 = vpop.f32.mrb[0].mxu0
    %249 = vmatprep.mubr.f32.mxu0 0.0
    %v250 = vand.u32 %v80, 4294901760
    %v251 = vsub.f32 %v80, %v250
    %v252 = vand.u32 %v251, 4294901760
    %v253 = vsub.f32 %v251, %v252
    %v254 = vand.u32 %v253, 4294901760
    %255 = vmatmul.mubr.f32.gmra.mrb[0].mxu0 %v254
    %v256 = vpop.f32.mrb[0].mxu0
    %v257 = vadd.f32 0.0, %v256
    %v258 = vpop.f32.mrb[0].mxu0
    %259 = vmatprep.mubr.f32.mxu0 0.0
    %v260 = vand.u32 %v81, 4294901760
    %v261 = vsub.f32 %v81, %v260
    %v262 = vand.u32 %v261, 4294901760
    %v263 = vsub.f32 %v261, %v262
    %v264 = vand.u32 %v263, 4294901760
    %265 = vmatmul.mubr.f32.gmra.mrb[0].mxu0 %v264
    %v266 = vpop.f32.mrb[0].mxu0
    %v267 = vadd.f32 0.0, %v266
    %v268 = vpop.f32.mrb[0].mxu0
    %269 = vmatprep.mubr.f32.mxu0 0.0
    %v270 = vand.u32 %v82, 4294901760
    %v271 = vsub.f32 %v82, %v270
    %v272 = vand.u32 %v271, 4294901760
    %v273 = vsub.f32 %v271, %v272
    %v274 = vand.u32 %v273, 4294901760
    %275 = vmatmul.mubr.f32.gmra.mrb[0].mxu0 %v274
    %v276 = vpop.f32.mrb[0].mxu0
    %v277 = vadd.f32 0.0, %v276
    %v278 = vpop.f32.mrb[0].mxu0
    %279 = vdwg.mxu0
    %280 = vmatprep.subr.mxu0 0.0
    %v281 = vand.u32 %v83, 4294901760
    %v282 = vsub.f32 %v83, %v281
    %v283 = vand.u32 %v282, 4294901760
    %v284 = vsub.f32 %v282, %v283
    %v285 = vand.u32 %v284, 4294901760
    %286 = vmatpush1.msra.mxu0 %v285
    %287 = vmatprep.subr.mxu0 0.0
    %v288 = vand.u32 %v84, 4294901760
    %v289 = vsub.f32 %v84, %v288
    %v290 = vand.u32 %v289, 4294901760
    %v291 = vsub.f32 %v289, %v290
    %v292 = vand.u32 %v291, 4294901760
    %293 = vmatpush1.msra.mxu0 %v292
    %294 = vmatprep.subr.mxu0 0.0
    %v295 = vand.u32 %v85, 4294901760
    %v296 = vsub.f32 %v85, %v295
    %v297 = vand.u32 %v296, 4294901760
    %v298 = vsub.f32 %v296, %v297
    %v299 = vand.u32 %v298, 4294901760
    %300 = vmatpush1.msra.mxu0 %v299
    %301 = vmatprep.subr.mxu0 0.0
    %v302 = vand.u32 %v86, 4294901760
    %v303 = vsub.f32 %v86, %v302
    %v304 = vand.u32 %v303, 4294901760
    %v305 = vsub.f32 %v303, %v304
    %v306 = vand.u32 %v305, 4294901760
    %307 = vmatpush1.msra.mxu0 %v306
    %308 = vmatprep.subr.mxu0 0.0
    %v309 = vand.u32 %v87, 4294901760
    %v310 = vsub.f32 %v87, %v309
    %v311 = vand.u32 %v310, 4294901760
    %v312 = vsub.f32 %v310, %v311
    %v313 = vand.u32 %v312, 4294901760
    %314 = vmatpush1.msra.mxu0 %v313
    %315 = vmatprep.subr.mxu0 0.0
    %v316 = vand.u32 %v88, 4294901760
    %v317 = vsub.f32 %v88, %v316
    %v318 = vand.u32 %v317, 4294901760
    %v319 = vsub.f32 %v317, %v318
    %v320 = vand.u32 %v319, 4294901760
    %321 = vmatpush1.msra.mxu0 %v320
    %322 = vmatprep.subr.mxu0 0.0
    %v323 = vand.u32 %v89, 4294901760
    %v324 = vsub.f32 %v89, %v323
    %v325 = vand.u32 %v324, 4294901760
    %v326 = vsub.f32 %v324, %v325
    %v327 = vand.u32 %v326, 4294901760
    %328 = vmatpush1.msra.mxu0 %v327
    %329 = vmatprep.subr.mxu0 0.0
    %v330 = vand.u32 %v90, 4294901760
    %v331 = vsub.f32 %v90, %v330
    %v332 = vand.u32 %v331, 4294901760
    %v333 = vsub.f32 %v331, %v332
    %v334 = vand.u32 %v333, 4294901760
    %335 = vmatpush1.msra.mxu0 %v334
    %336 = vmatprep.subr.mxu0 0.0
    %v337 = vand.u32 %v91, 4294901760
    %v338 = vsub.f32 %v91, %v337
    %v339 = vand.u32 %v338, 4294901760
    %v340 = vsub.f32 %v338, %v339
    %v341 = vand.u32 %v340, 4294901760
    %342 = vmatpush1.msra.mxu0 %v341
    %343 = vmatprep.subr.mxu0 0.0
    %v344 = vand.u32 %v92, 4294901760
    %v345 = vsub.f32 %v92, %v344
    %v346 = vand.u32 %v345, 4294901760
    %v347 = vsub.f32 %v345, %v346
    %v348 = vand.u32 %v347, 4294901760
    %349 = vmatpush1.msra.mxu0 %v348
    %350 = vmatprep.subr.mxu0 0.0
    %v351 = vand.u32 %v93, 4294901760
    %v352 = vsub.f32 %v93, %v351
    %v353 = vand.u32 %v352, 4294901760
    %v354 = vsub.f32 %v352, %v353
    %v355 = vand.u32 %v354, 4294901760
    %356 = vmatpush1.msra.mxu0 %v355
    %357 = vmatprep.subr.mxu0 0.0
    %v358 = vand.u32 %v94, 4294901760
    %v359 = vsub.f32 %v94, %v358
    %v360 = vand.u32 %v359, 4294901760
    %v361 = vsub.f32 %v359, %v360
    %v362 = vand.u32 %v361, 4294901760
    %363 = vmatpush1.msra.mxu0 %v362
    %364 = vmatprep.subr.mxu0 0.0
    %v365 = vand.u32 %v95, 4294901760
    %v366 = vsub.f32 %v95, %v365
    %v367 = vand.u32 %v366, 4294901760
    %v368 = vsub.f32 %v366, %v367
    %v369 = vand.u32 %v368, 4294901760
    %370 = vmatpush1.msra.mxu0 %v369
    %371 = vmatprep.subr.mxu0 0.0
    %v372 = vand.u32 %v96, 4294901760
    %v373 = vsub.f32 %v96, %v372
    %v374 = vand.u32 %v373, 4294901760
    %v375 = vsub.f32 %v373, %v374
    %v376 = vand.u32 %v375, 4294901760
    %377 = vmatpush1.msra.mxu0 %v376
    %378 = vmatprep.subr.mxu0 0.0
    %v379 = vand.u32 %v97, 4294901760
    %v380 = vsub.f32 %v97, %v379
    %v381 = vand.u32 %v380, 4294901760
    %v382 = vsub.f32 %v380, %v381
    %v383 = vand.u32 %v382, 4294901760
    %384 = vmatpush1.msra.mxu0 %v383
    %385 = vmatprep.subr.mxu0 0.0
    %v386 = vand.u32 %v98, 4294901760
    %v387 = vsub.f32 %v98, %v386
    %v388 = vand.u32 %v387, 4294901760
    %v389 = vsub.f32 %v387, %v388
    %v390 = vand.u32 %v389, 4294901760
    %391 = vmatpush1.msra.mxu0 %v390
    %392 = vmatprep.subr.mxu0 0.0
    %393 = vmatpush1.msra.mxu0 0.0
    %394 = vmatprep.subr.mxu0 0.0
    %395 = vmatpush1.msra.mxu0 0.0
    %396 = vmatprep.subr.mxu0 0.0
    %397 = vmatpush1.msra.mxu0 0.0
    %398 = vmatprep.subr.mxu0 0.0
    %399 = vmatpush1.msra.mxu0 0.0
    %400 = vmatprep.subr.mxu0 0.0
    %401 = vmatpush1.msra.mxu0 0.0
    %402 = vmatprep.subr.mxu0 0.0
    %403 = vmatpush1.msra.mxu0 0.0
    %404 = vmatprep.subr.mxu0 0.0
    %405 = vmatpush1.msra.mxu0 0.0
    %406 = vmatprep.subr.mxu0 0.0
    %407 = vmatpush1.msra.mxu0 0.0
    %408 = vmatprep.subr.mxu0 0.0
    %409 = vmatpush1.msra.mxu0 0.0
    %410 = vmatprep.subr.mxu0 0.0
    %411 = vmatpush1.msra.mxu0 0.0
    %412 = vmatprep.subr.mxu0 0.0
    %413 = vmatpush1.msra.mxu0 0.0
    %414 = vmatprep.subr.mxu0 0.0
    %415 = vmatpush1.msra.mxu0 0.0
    %416 = vmatprep.subr.mxu0 0.0
    %417 = vmatpush1.msra.mxu0 0.0
    %418 = vmatprep.subr.mxu0 0.0
    %419 = vmatpush1.msra.mxu0 0.0
    %420 = vmatprep.subr.mxu0 0.0
    %421 = vmatpush1.msra.mxu0 0.0
    %422 = vmatprep.subr.mxu0 0.0
    %423 = vmatpush1.msra.mxu0 0.0
    %424 = vmatprep.mubr.f32.mxu0 0.0
    %v425 = vand.u32 %v73, 4294901760
    %426 = vmatmul.mubr.f32.gmra.mrb[0].mxu0 %v425
    %v427 = vpop.f32.mrb[0].mxu0
    %v428 = vadd.f32 %v187, %v427
    %v429 = vpop.f32.mrb[0].mxu0
    %430 = vmatprep.mubr.f32.mxu0 0.0
    %v431 = vand.u32 %v74, 4294901760
    %432 = vmatmul.mubr.f32.gmra.mrb[0].mxu0 %v431
    %v433 = vpop.f32.mrb[0].mxu0
    %v434 = vadd.f32 %v197, %v433
    %v435 = vpop.f32.mrb[0].mxu0
    %436 = vmatprep.mubr.f32.mxu0 0.0
    %v437 = vand.u32 %v75, 4294901760
    %438 = vmatmul.mubr.f32.gmra.mrb[0].mxu0 %v437
    %v439 = vpop.f32.mrb[0].mxu0
    %v440 = vadd.f32 %v207, %v439
    %v441 = vpop.f32.mrb[0].mxu0
    %442 = vmatprep.mubr.f32.mxu0 0.0
    %v443 = vand.u32 %v76, 4294901760
    %444 = vmatmul.mubr.f32.gmra.mrb[0].mxu0 %v443
    %v445 = vpop.f32.mrb[0].mxu0
    %v446 = vadd.f32 %v217, %v445
    %v447 = vpop.f32.mrb[0].mxu0
    %448 = vmatprep.mubr.f32.mxu0 0.0
    %v449 = vand.u32 %v77, 4294901760
    %450 = vmatmul.mubr.f32.gmra.mrb[0].mxu0 %v449
    %v451 = vpop.f32.mrb[0].mxu0
    %v452 = vadd.f32 %v227, %v451
    %v453 = vpop.f32.mrb[0].mxu0
    %454 = vmatprep.mubr.f32.mxu0 0.0
    %v455 = vand.u32 %v78, 4294901760
    %456 = vmatmul.mubr.f32.gmra.mrb[0].mxu0 %v455
    %v457 = vpop.f32.mrb[0].mxu0
    %v458 = vadd.f32 %v237, %v457
    %v459 = vpop.f32.mrb[0].mxu0
    %460 = vmatprep.mubr.f32.mxu0 0.0
    %v461 = vand.u32 %v79, 4294901760
    %462 = vmatmul.mubr.f32.gmra.mrb[0].mxu0 %v461
    %v463 = vpop.f32.mrb[0].mxu0
    %v464 = vadd.f32 %v247, %v463
    %v465 = vpop.f32.mrb[0].mxu0
    %466 = vmatprep.mubr.f32.mxu0 0.0
    %v467 = vand.u32 %v80, 4294901760
    %468 = vmatmul.mubr.f32.gmra.mrb[0].mxu0 %v467
    %v469 = vpop.f32.mrb[0].mxu0
    %v470 = vadd.f32 %v257, %v469
    %v471 = vpop.f32.mrb[0].mxu0
    %472 = vmatprep.mubr.f32.mxu0 0.0
    %v473 = vand.u32 %v81, 4294901760
    %474 = vmatmul.mubr.f32.gmra.mrb[0].mxu0 %v473
    %v475 = vpop.f32.mrb[0].mxu0
    %v476 = vadd.f32 %v267, %v475
    %v477 = vpop.f32.mrb[0].mxu0
    %478 = vmatprep.mubr.f32.mxu0 0.0
    %v479 = vand.u32 %v82, 4294901760
    %480 = vmatmul.mubr.f32.gmra.mrb[0].mxu0 %v479
    %v481 = vpop.f32.mrb[0].mxu0
    %v482 = vadd.f32 %v277, %v481
    %v483 = vpop.f32.mrb[0].mxu0
    %484 = vdwg.mxu0
    %485 = vmatprep.subr.mxu0 0.0
    %v486 = vand.u32 %v83, 4294901760
    %v487 = vsub.f32 %v83, %v486
    %488 = vmatpush1.msra.mxu0 %v487
    %489 = vmatprep.subr.mxu0 0.0
    %v490 = vand.u32 %v84, 4294901760
    %v491 = vsub.f32 %v84, %v490
    %492 = vmatpush1.msra.mxu0 %v491
    %493 = vmatprep.subr.mxu0 0.0
    %v494 = vand.u32 %v85, 4294901760
    %v495 = vsub.f32 %v85, %v494
    %496 = vmatpush1.msra.mxu0 %v495
    %497 = vmatprep.subr.mxu0 0.0
    %v498 = vand.u32 %v86, 4294901760
    %v499 = vsub.f32 %v86, %v498
    %500 = vmatpush1.msra.mxu0 %v499
    %501 = vmatprep.subr.mxu0 0.0
    %v502 = vand.u32 %v87, 4294901760
    %v503 = vsub.f32 %v87, %v502
    %504 = vmatpush1.msra.mxu0 %v503
    %505 = vmatprep.subr.mxu0 0.0
    %v506 = vand.u32 %v88, 4294901760
    %v507 = vsub.f32 %v88, %v506
    %508 = vmatpush1.msra.mxu0 %v507
    %509 = vmatprep.subr.mxu0 0.0
    %v510 = vand.u32 %v89, 4294901760
    %v511 = vsub.f32 %v89, %v510
    %512 = vmatpush1.msra.mxu0 %v511
    %513 = vmatprep.subr.mxu0 0.0
    %v514 = vand.u32 %v90, 4294901760
    %v515 = vsub.f32 %v90, %v514
    %516 = vmatpush1.msra.mxu0 %v515
    %517 = vmatprep.subr.mxu0 0.0
    %v518 = vand.u32 %v91, 4294901760
    %v519 = vsub.f32 %v91, %v518
    %520 = vmatpush1.msra.mxu0 %v519
    %521 = vmatprep.subr.mxu0 0.0
    %v522 = vand.u32 %v92, 4294901760
    %v523 = vsub.f32 %v92, %v522
    %524 = vmatpush1.msra.mxu0 %v523
    %525 = vmatprep.subr.mxu0 0.0
    %v526 = vand.u32 %v93, 4294901760
    %v527 = vsub.f32 %v93, %v526
    %528 = vmatpush1.msra.mxu0 %v527
    %529 = vmatprep.subr.mxu0 0.0
    %v530 = vand.u32 %v94, 4294901760
    %v531 = vsub.f32 %v94, %v530
    %532 = vmatpush1.msra.mxu0 %v531
    %533 = vmatprep.subr.mxu0 0.0
    %v534 = vand.u32 %v95, 4294901760
    %v535 = vsub.f32 %v95, %v534
    %536 = vmatpush1.msra.mxu0 %v535
    %537 = vmatprep.subr.mxu0 0.0
    %v538 = vand.u32 %v96, 4294901760
    %v539 = vsub.f32 %v96, %v538
    %540 = vmatpush1.msra.mxu0 %v539
    %541 = vmatprep.subr.mxu0 0.0
    %v542 = vand.u32 %v97, 4294901760
    %v543 = vsub.f32 %v97, %v542
    %544 = vmatpush1.msra.mxu0 %v543
    %545 = vmatprep.subr.mxu0 0.0
    %v546 = vand.u32 %v98, 4294901760
    %v547 = vsub.f32 %v98, %v546
    %548 = vmatpush1.msra.mxu0 %v547
    %549 = vmatprep.subr.mxu0 0.0
    %550 = vmatpush1.msra.mxu0 0.0
    %551 = vmatprep.subr.mxu0 0.0
    %552 = vmatpush1.msra.mxu0 0.0
    %553 = vmatprep.subr.mxu0 0.0
    %554 = vmatpush1.msra.mxu0 0.0
    %555 = vmatprep.subr.mxu0 0.0
    %556 = vmatpush1.msra.mxu0 0.0
    %557 = vmatprep.subr.mxu0 0.0
    %558 = vmatpush1.msra.mxu0 0.0
    %559 = vmatprep.subr.mxu0 0.0
    %560 = vmatpush1.msra.mxu0 0.0
    %561 = vmatprep.subr.mxu0 0.0
    %562 = vmatpush1.msra.mxu0 0.0
    %563 = vmatprep.subr.mxu0 0.0
    %564 = vmatpush1.msra.mxu0 0.0
    %565 = vmatprep.subr.mxu0 0.0
    %566 = vmatpush1.msra.mxu0 0.0
    %567 = vmatprep.subr.mxu0 0.0
    %568 = vmatpush1.msra.mxu0 0.0
    %569 = vmatprep.subr.mxu0 0.0
    %570 = vmatpush1.msra.mxu0 0.0
    %571 = vmatprep.subr.mxu0 0.0
    %572 = vmatpush1.msra.mxu0 0.0
    %573 = vmatprep.subr.mxu0 0.0
    %574 = vmatpush1.msra.mxu0 0.0
    %575 = vmatprep.subr.mxu0 0.0
    %576 = vmatpush1.msra.mxu0 0.0
    %577 = vmatprep.subr.mxu0 0.0
    %578 = vmatpush1.msra.mxu0 0.0
    %579 = vmatprep.subr.mxu0 0.0
    %580 = vmatpush1.msra.mxu0 0.0
    %581 = vmatprep.mubr.f32.mxu0 0.0
    %v582 = vand.u32 %v73, 4294901760
    %v583 = vsub.f32 %v73, %v582
    %584 = vmatmul.mubr.f32.gmra.mrb[0].mxu0 %v583
    %v585 = vpop.f32.mrb[0].mxu0
    %v586 = vadd.f32 %v428, %v585
    %v587 = vpop.f32.mrb[0].mxu0
    %588 = vmatprep.mubr.f32.mxu0 0.0
    %v589 = vand.u32 %v74, 4294901760
    %v590 = vsub.f32 %v74, %v589
    %591 = vmatmul.mubr.f32.gmra.mrb[0].mxu0 %v590
    %v592 = vpop.f32.mrb[0].mxu0
    %v593 = vadd.f32 %v434, %v592
    %v594 = vpop.f32.mrb[0].mxu0
    %595 = vmatprep.mubr.f32.mxu0 0.0
    %v596 = vand.u32 %v75, 4294901760
    %v597 = vsub.f32 %v75, %v596
    %598 = vmatmul.mubr.f32.gmra.mrb[0].mxu0 %v597
    %v599 = vpop.f32.mrb[0].mxu0
    %v600 = vadd.f32 %v440, %v599
    %v601 = vpop.f32.mrb[0].mxu0
    %602 = vmatprep.mubr.f32.mxu0 0.0
    %v603 = vand.u32 %v76, 4294901760
    %v604 = vsub.f32 %v76, %v603
    %605 = vmatmul.mubr.f32.gmra.mrb[0].mxu0 %v604
    %v606 = vpop.f32.mrb[0].mxu0
    %v607 = vadd.f32 %v446, %v606
    %v608 = vpop.f32.mrb[0].mxu0
    %609 = vmatprep.mubr.f32.mxu0 0.0
    %v610 = vand.u32 %v77, 4294901760
    %v611 = vsub.f32 %v77, %v610
    %612 = vmatmul.mubr.f32.gmra.mrb[0].mxu0 %v611
    %v613 = vpop.f32.mrb[0].mxu0
    %v614 = vadd.f32 %v452, %v613
    %v615 = vpop.f32.mrb[0].mxu0
    %616 = vmatprep.mubr.f32.mxu0 0.0
    %v617 = vand.u32 %v78, 4294901760
    %v618 = vsub.f32 %v78, %v617
    %619 = vmatmul.mubr.f32.gmra.mrb[0].mxu0 %v618
    %v620 = vpop.f32.mrb[0].mxu0
    %v621 = vadd.f32 %v458, %v620
    %v622 = vpop.f32.mrb[0].mxu0
    %623 = vmatprep.mubr.f32.mxu0 0.0
    %v624 = vand.u32 %v79, 4294901760
    %v625 = vsub.f32 %v79, %v624
    %626 = vmatmul.mubr.f32.gmra.mrb[0].mxu0 %v625
    %v627 = vpop.f32.mrb[0].mxu0
    %v628 = vadd.f32 %v464, %v627
    %v629 = vpop.f32.mrb[0].mxu0
    %630 = vmatprep.mubr.f32.mxu0 0.0
    %v631 = vand.u32 %v80, 4294901760
    %v632 = vsub.f32 %v80, %v631
    %633 = vmatmul.mubr.f32.gmra.mrb[0].mxu0 %v632
    %v634 = vpop.f32.mrb[0].mxu0
    %v635 = vadd.f32 %v470, %v634
    %v636 = vpop.f32.mrb[0].mxu0
    %637 = vmatprep.mubr.f32.mxu0 0.0
    %v638 = vand.u32 %v81, 4294901760
    %v639 = vsub.f32 %v81, %v638
    %640 = vmatmul.mubr.f32.gmra.mrb[0].mxu0 %v639
    %v641 = vpop.f32.mrb[0].mxu0
    %v642 = vadd.f32 %v476, %v641
    %v643 = vpop.f32.mrb[0].mxu0
    %644 = vmatprep.mubr.f32.mxu0 0.0
    %v645 = vand.u32 %v82, 4294901760
    %v646 = vsub.f32 %v82, %v645
    %647 = vmatmul.mubr.f32.gmra.mrb[0].mxu0 %v646
    %v648 = vpop.f32.mrb[0].mxu0
    %v649 = vadd.f32 %v482, %v648
    %v650 = vpop.f32.mrb[0].mxu0
    %651 = vdwg.mxu0
    %652 = vmatprep.subr.mxu0 0.0
    %v653 = vand.u32 %v83, 4294901760
    %654 = vmatpush1.msra.mxu0 %v653
    %655 = vmatprep.subr.mxu0 0.0
    %v656 = vand.u32 %v84, 4294901760
    %657 = vmatpush1.msra.mxu0 %v656
    %658 = vmatprep.subr.mxu0 0.0
    %v659 = vand.u32 %v85, 4294901760
    %660 = vmatpush1.msra.mxu0 %v659
    %661 = vmatprep.subr.mxu0 0.0
    %v662 = vand.u32 %v86, 4294901760
    %663 = vmatpush1.msra.mxu0 %v662
    %664 = vmatprep.subr.mxu0 0.0
    %v665 = vand.u32 %v87, 4294901760
    %666 = vmatpush1.msra.mxu0 %v665
    %667 = vmatprep.subr.mxu0 0.0
    %v668 = vand.u32 %v88, 4294901760
    %669 = vmatpush1.msra.mxu0 %v668
    %670 = vmatprep.subr.mxu0 0.0
    %v671 = vand.u32 %v89, 4294901760
    %672 = vmatpush1.msra.mxu0 %v671
    %673 = vmatprep.subr.mxu0 0.0
    %v674 = vand.u32 %v90, 4294901760
    %675 = vmatpush1.msra.mxu0 %v674
    %676 = vmatprep.subr.mxu0 0.0
    %v677 = vand.u32 %v91, 4294901760
    %678 = vmatpush1.msra.mxu0 %v677
    %679 = vmatprep.subr.mxu0 0.0
    %v680 = vand.u32 %v92, 4294901760
    %681 = vmatpush1.msra.mxu0 %v680
    %682 = vmatprep.subr.mxu0 0.0
    %v683 = vand.u32 %v93, 4294901760
    %684 = vmatpush1.msra.mxu0 %v683
    %685 = vmatprep.subr.mxu0 0.0
    %v686 = vand.u32 %v94, 4294901760
    %687 = vmatpush1.msra.mxu0 %v686
    %688 = vmatprep.subr.mxu0 0.0
    %v689 = vand.u32 %v95, 4294901760
    %690 = vmatpush1.msra.mxu0 %v689
    %691 = vmatprep.subr.mxu0 0.0
    %v692 = vand.u32 %v96, 4294901760
    %693 = vmatpush1.msra.mxu0 %v692
    %694 = vmatprep.subr.mxu0 0.0
    %v695 = vand.u32 %v97, 4294901760
    %696 = vmatpush1.msra.mxu0 %v695
    %697 = vmatprep.subr.mxu0 0.0
    %v698 = vand.u32 %v98, 4294901760
    %699 = vmatpush1.msra.mxu0 %v698
    %700 = vmatprep.subr.mxu0 0.0
    %701 = vmatpush1.msra.mxu0 0.0
    %702 = vmatprep.subr.mxu0 0.0
    %703 = vmatpush1.msra.mxu0 0.0
    %704 = vmatprep.subr.mxu0 0.0
    %705 = vmatpush1.msra.mxu0 0.0
    %706 = vmatprep.subr.mxu0 0.0
    %707 = vmatpush1.msra.mxu0 0.0
    %708 = vmatprep.subr.mxu0 0.0
    %709 = vmatpush1.msra.mxu0 0.0
    %710 = vmatprep.subr.mxu0 0.0
    %711 = vmatpush1.msra.mxu0 0.0
    %712 = vmatprep.subr.mxu0 0.0
    %713 = vmatpush1.msra.mxu0 0.0
    %714 = vmatprep.subr.mxu0 0.0
    %715 = vmatpush1.msra.mxu0 0.0
    %716 = vmatprep.subr.mxu0 0.0
    %717 = vmatpush1.msra.mxu0 0.0
    %718 = vmatprep.subr.mxu0 0.0
    %719 = vmatpush1.msra.mxu0 0.0
    %720 = vmatprep.subr.mxu0 0.0
    %721 = vmatpush1.msra.mxu0 0.0
    %722 = vmatprep.subr.mxu0 0.0
    %723 = vmatpush1.msra.mxu0 0.0
    %724 = vmatprep.subr.mxu0 0.0
    %725 = vmatpush1.msra.mxu0 0.0
    %726 = vmatprep.subr.mxu0 0.0
    %727 = vmatpush1.msra.mxu0 0.0
    %728 = vmatprep.subr.mxu0 0.0
    %729 = vmatpush1.msra.mxu0 0.0
    %730 = vmatprep.subr.mxu0 0.0
    %731 = vmatpush1.msra.mxu0 0.0
    %732 = vmatprep.mubr.f32.mxu0 0.0
    %v733 = vand.u32 %v73, 4294901760
    %v734 = vsub.f32 %v73, %v733
    %v735 = vand.u32 %v734, 4294901760
    %736 = vmatmul.mubr.f32.gmra.mrb[0].mxu0 %v735
    %v737 = vpop.f32.mrb[0].mxu0
    %v738 = vadd.f32 %v586, %v737
    %v739 = vpop.f32.mrb[0].mxu0
    %740 = vmatprep.mubr.f32.mxu0 0.0
    %v741 = vand.u32 %v74, 4294901760
    %v742 = vsub.f32 %v74, %v741
    %v743 = vand.u32 %v742, 4294901760
    %744 = vmatmul.mubr.f32.gmra.mrb[0].mxu0 %v743
    %v745 = vpop.f32.mrb[0].mxu0
    %v746 = vadd.f32 %v593, %v745
    %v747 = vpop.f32.mrb[0].mxu0
    %748 = vmatprep.mubr.f32.mxu0 0.0
    %v749 = vand.u32 %v75, 4294901760
    %v750 = vsub.f32 %v75, %v749
    %v751 = vand.u32 %v750, 4294901760
    %752 = vmatmul.mubr.f32.gmra.mrb[0].mxu0 %v751
    %v753 = vpop.f32.mrb[0].mxu0
    %v754 = vadd.f32 %v600, %v753
    %v755 = vpop.f32.mrb[0].mxu0
    %756 = vmatprep.mubr.f32.mxu0 0.0
    %v757 = vand.u32 %v76, 4294901760
    %v758 = vsub.f32 %v76, %v757
    %v759 = vand.u32 %v758, 4294901760
    %760 = vmatmul.mubr.f32.gmra.mrb[0].mxu0 %v759
    %v761 = vpop.f32.mrb[0].mxu0
    %v762 = vadd.f32 %v607, %v761
    %v763 = vpop.f32.mrb[0].mxu0
    %764 = vmatprep.mubr.f32.mxu0 0.0
    %v765 = vand.u32 %v77, 4294901760
    %v766 = vsub.f32 %v77, %v765
    %v767 = vand.u32 %v766, 4294901760
    %768 = vmatmul.mubr.f32.gmra.mrb[0].mxu0 %v767
    %v769 = vpop.f32.mrb[0].mxu0
    %v770 = vadd.f32 %v614, %v769
    %v771 = vpop.f32.mrb[0].mxu0
    %772 = vmatprep.mubr.f32.mxu0 0.0
    %v773 = vand.u32 %v78, 4294901760
    %v774 = vsub.f32 %v78, %v773
    %v775 = vand.u32 %v774, 4294901760
    %776 = vmatmul.mubr.f32.gmra.mrb[0].mxu0 %v775
    %v777 = vpop.f32.mrb[0].mxu0
    %v778 = vadd.f32 %v621, %v777
    %v779 = vpop.f32.mrb[0].mxu0
    %780 = vmatprep.mubr.f32.mxu0 0.0
    %v781 = vand.u32 %v79, 4294901760
    %v782 = vsub.f32 %v79, %v781
    %v783 = vand.u32 %v782, 4294901760
    %784 = vmatmul.mubr.f32.gmra.mrb[0].mxu0 %v783
    %v785 = vpop.f32.mrb[0].mxu0
    %v786 = vadd.f32 %v628, %v785
    %v787 = vpop.f32.mrb[0].mxu0
    %788 = vmatprep.mubr.f32.mxu0 0.0
    %v789 = vand.u32 %v80, 4294901760
    %v790 = vsub.f32 %v80, %v789
    %v791 = vand.u32 %v790, 4294901760
    %792 = vmatmul.mubr.f32.gmra.mrb[0].mxu0 %v791
    %v793 = vpop.f32.mrb[0].mxu0
    %v794 = vadd.f32 %v635, %v793
    %v795 = vpop.f32.mrb[0].mxu0
    %796 = vmatprep.mubr.f32.mxu0 0.0
    %v797 = vand.u32 %v81, 4294901760
    %v798 = vsub.f32 %v81, %v797
    %v799 = vand.u32 %v798, 4294901760
    %800 = vmatmul.mubr.f32.gmra.mrb[0].mxu0 %v799
    %v801 = vpop.f32.mrb[0].mxu0
    %v802 = vadd.f32 %v642, %v801
    %v803 = vpop.f32.mrb[0].mxu0
    %804 = vmatprep.mubr.f32.mxu0 0.0
    %v805 = vand.u32 %v82, 4294901760
    %v806 = vsub.f32 %v82, %v805
    %v807 = vand.u32 %v806, 4294901760
    %808 = vmatmul.mubr.f32.gmra.mrb[0].mxu0 %v807
    %v809 = vpop.f32.mrb[0].mxu0
    %v810 = vadd.f32 %v649, %v809
    %v811 = vpop.f32.mrb[0].mxu0
    %812 = vdwg.mxu0
    %813 = vmatprep.subr.mxu0 0.0
    %v814 = vand.u32 %v83, 4294901760
    %v815 = vsub.f32 %v83, %v814
    %v816 = vand.u32 %v815, 4294901760
    %817 = vmatpush1.msra.mxu0 %v816
    %818 = vmatprep.subr.mxu0 0.0
    %v819 = vand.u32 %v84, 4294901760
    %v820 = vsub.f32 %v84, %v819
    %v821 = vand.u32 %v820, 4294901760
    %822 = vmatpush1.msra.mxu0 %v821
    %823 = vmatprep.subr.mxu0 0.0
    %v824 = vand.u32 %v85, 4294901760
    %v825 = vsub.f32 %v85, %v824
    %v826 = vand.u32 %v825, 4294901760
    %827 = vmatpush1.msra.mxu0 %v826
    %828 = vmatprep.subr.mxu0 0.0
    %v829 = vand.u32 %v86, 4294901760
    %v830 = vsub.f32 %v86, %v829
    %v831 = vand.u32 %v830, 4294901760
    %832 = vmatpush1.msra.mxu0 %v831
    %833 = vmatprep.subr.mxu0 0.0
    %v834 = vand.u32 %v87, 4294901760
    %v835 = vsub.f32 %v87, %v834
    %v836 = vand.u32 %v835, 4294901760
    %837 = vmatpush1.msra.mxu0 %v836
    %838 = vmatprep.subr.mxu0 0.0
    %v839 = vand.u32 %v88, 4294901760
    %v840 = vsub.f32 %v88, %v839
    %v841 = vand.u32 %v840, 4294901760
    %842 = vmatpush1.msra.mxu0 %v841
    %843 = vmatprep.subr.mxu0 0.0
    %v844 = vand.u32 %v89, 4294901760
    %v845 = vsub.f32 %v89, %v844
    %v846 = vand.u32 %v845, 4294901760
    %847 = vmatpush1.msra.mxu0 %v846
    %848 = vmatprep.subr.mxu0 0.0
    %v849 = vand.u32 %v90, 4294901760
    %v850 = vsub.f32 %v90, %v849
    %v851 = vand.u32 %v850, 4294901760
    %852 = vmatpush1.msra.mxu0 %v851
    %853 = vmatprep.subr.mxu0 0.0
    %v854 = vand.u32 %v91, 4294901760
    %v855 = vsub.f32 %v91, %v854
    %v856 = vand.u32 %v855, 4294901760
    %857 = vmatpush1.msra.mxu0 %v856
    %858 = vmatprep.subr.mxu0 0.0
    %v859 = vand.u32 %v92, 4294901760
    %v860 = vsub.f32 %v92, %v859
    %v861 = vand.u32 %v860, 4294901760
    %862 = vmatpush1.msra.mxu0 %v861
    %863 = vmatprep.subr.mxu0 0.0
    %v864 = vand.u32 %v93, 4294901760
    %v865 = vsub.f32 %v93, %v864
    %v866 = vand.u32 %v865, 4294901760
    %867 = vmatpush1.msra.mxu0 %v866
    %868 = vmatprep.subr.mxu0 0.0
    %v869 = vand.u32 %v94, 4294901760
    %v870 = vsub.f32 %v94, %v869
    %v871 = vand.u32 %v870, 4294901760
    %872 = vmatpush1.msra.mxu0 %v871
    %873 = vmatprep.subr.mxu0 0.0
    %v874 = vand.u32 %v95, 4294901760
    %v875 = vsub.f32 %v95, %v874
    %v876 = vand.u32 %v875, 4294901760
    %877 = vmatpush1.msra.mxu0 %v876
    %878 = vmatprep.subr.mxu0 0.0
    %v879 = vand.u32 %v96, 4294901760
    %v880 = vsub.f32 %v96, %v879
    %v881 = vand.u32 %v880, 4294901760
    %882 = vmatpush1.msra.mxu0 %v881
    %883 = vmatprep.subr.mxu0 0.0
    %v884 = vand.u32 %v97, 4294901760
    %v885 = vsub.f32 %v97, %v884
    %v886 = vand.u32 %v885, 4294901760
    %887 = vmatpush1.msra.mxu0 %v886
    %888 = vmatprep.subr.mxu0 0.0
    %v889 = vand.u32 %v98, 4294901760
    %v890 = vsub.f32 %v98, %v889
    %v891 = vand.u32 %v890, 4294901760
    %892 = vmatpush1.msra.mxu0 %v891
    %893 = vmatprep.subr.mxu0 0.0
    %894 = vmatpush1.msra.mxu0 0.0
    %895 = vmatprep.subr.mxu0 0.0
    %896 = vmatpush1.msra.mxu0 0.0
    %897 = vmatprep.subr.mxu0 0.0
    %898 = vmatpush1.msra.mxu0 0.0
    %899 = vmatprep.subr.mxu0 0.0
    %900 = vmatpush1.msra.mxu0 0.0
    %901 = vmatprep.subr.mxu0 0.0
    %902 = vmatpush1.msra.mxu0 0.0
    %903 = vmatprep.subr.mxu0 0.0
    %904 = vmatpush1.msra.mxu0 0.0
    %905 = vmatprep.subr.mxu0 0.0
    %906 = vmatpush1.msra.mxu0 0.0
    %907 = vmatprep.subr.mxu0 0.0
    %908 = vmatpush1.msra.mxu0 0.0
    %909 = vmatprep.subr.mxu0 0.0
    %910 = vmatpush1.msra.mxu0 0.0
    %911 = vmatprep.subr.mxu0 0.0
    %912 = vmatpush1.msra.mxu0 0.0
    %913 = vmatprep.subr.mxu0 0.0
    %914 = vmatpush1.msra.mxu0 0.0
    %915 = vmatprep.subr.mxu0 0.0
    %916 = vmatpush1.msra.mxu0 0.0
    %917 = vmatprep.subr.mxu0 0.0
    %918 = vmatpush1.msra.mxu0 0.0
    %919 = vmatprep.subr.mxu0 0.0
    %920 = vmatpush1.msra.mxu0 0.0
    %921 = vmatprep.subr.mxu0 0.0
    %922 = vmatpush1.msra.mxu0 0.0
    %923 = vmatprep.subr.mxu0 0.0
    %924 = vmatpush1.msra.mxu0 0.0
    %925 = vmatprep.mubr.f32.mxu0 0.0
    %v926 = vand.u32 %v73, 4294901760
    %927 = vmatmul.mubr.f32.gmra.mrb[0].mxu0 %v926
    %v928 = vpop.f32.mrb[0].mxu0
    %v929 = vadd.f32 %v738, %v928
    %v930 = vpop.f32.mrb[0].mxu0
    %931 = vmatprep.mubr.f32.mxu0 0.0
    %v932 = vand.u32 %v74, 4294901760
    %933 = vmatmul.mubr.f32.gmra.mrb[0].mxu0 %v932
    %v934 = vpop.f32.mrb[0].mxu0
    %v935 = vadd.f32 %v746, %v934
    %v936 = vpop.f32.mrb[0].mxu0
    %937 = vmatprep.mubr.f32.mxu0 0.0
    %v938 = vand.u32 %v75, 4294901760
    %939 = vmatmul.mubr.f32.gmra.mrb[0].mxu0 %v938
    %v940 = vpop.f32.mrb[0].mxu0
    %v941 = vadd.f32 %v754, %v940
    %v942 = vpop.f32.mrb[0].mxu0
    %943 = vmatprep.mubr.f32.mxu0 0.0
    %v944 = vand.u32 %v76, 4294901760
    %945 = vmatmul.mubr.f32.gmra.mrb[0].mxu0 %v944
    %v946 = vpop.f32.mrb[0].mxu0
    %v947 = vadd.f32 %v762, %v946
    %v948 = vpop.f32.mrb[0].mxu0
    %949 = vmatprep.mubr.f32.mxu0 0.0
    %v950 = vand.u32 %v77, 4294901760
    %951 = vmatmul.mubr.f32.gmra.mrb[0].mxu0 %v950
    %v952 = vpop.f32.mrb[0].mxu0
    %v953 = vadd.f32 %v770, %v952
    %v954 = vpop.f32.mrb[0].mxu0
    %955 = vmatprep.mubr.f32.mxu0 0.0
    %v956 = vand.u32 %v78, 4294901760
    %957 = vmatmul.mubr.f32.gmra.mrb[0].mxu0 %v956
    %v958 = vpop.f32.mrb[0].mxu0
    %v959 = vadd.f32 %v778, %v958
    %v960 = vpop.f32.mrb[0].mxu0
    %961 = vmatprep.mubr.f32.mxu0 0.0
    %v962 = vand.u32 %v79, 4294901760
    %963 = vmatmul.mubr.f32.gmra.mrb[0].mxu0 %v962
    %v964 = vpop.f32.mrb[0].mxu0
    %v965 = vadd.f32 %v786, %v964
    %v966 = vpop.f32.mrb[0].mxu0
    %967 = vmatprep.mubr.f32.mxu0 0.0
    %v968 = vand.u32 %v80, 4294901760
    %969 = vmatmul.mubr.f32.gmra.mrb[0].mxu0 %v968
    %v970 = vpop.f32.mrb[0].mxu0
    %v971 = vadd.f32 %v794, %v970
    %v972 = vpop.f32.mrb[0].mxu0
    %973 = vmatprep.mubr.f32.mxu0 0.0
    %v974 = vand.u32 %v81, 4294901760
    %975 = vmatmul.mubr.f32.gmra.mrb[0].mxu0 %v974
    %v976 = vpop.f32.mrb[0].mxu0
    %v977 = vadd.f32 %v802, %v976
    %v978 = vpop.f32.mrb[0].mxu0
    %979 = vmatprep.mubr.f32.mxu0 0.0
    %v980 = vand.u32 %v82, 4294901760
    %981 = vmatmul.mubr.f32.gmra.mrb[0].mxu0 %v980
    %v982 = vpop.f32.mrb[0].mxu0
    %v983 = vadd.f32 %v810, %v982
    %v984 = vpop.f32.mrb[0].mxu0
    %985 = vdwg.mxu0
    %986 = vmatprep.subr.mxu0 0.0
    %v987 = vand.u32 %v83, 4294901760
    %988 = vmatpush1.msra.mxu0 %v987
    %989 = vmatprep.subr.mxu0 0.0
    %v990 = vand.u32 %v84, 4294901760
    %991 = vmatpush1.msra.mxu0 %v990
    %992 = vmatprep.subr.mxu0 0.0
    %v993 = vand.u32 %v85, 4294901760
    %994 = vmatpush1.msra.mxu0 %v993
    %995 = vmatprep.subr.mxu0 0.0
    %v996 = vand.u32 %v86, 4294901760
    %997 = vmatpush1.msra.mxu0 %v996
    %998 = vmatprep.subr.mxu0 0.0
    %v999 = vand.u32 %v87, 4294901760
    %1000 = vmatpush1.msra.mxu0 %v999
    %1001 = vmatprep.subr.mxu0 0.0
    %v1002 = vand.u32 %v88, 4294901760
    %1003 = vmatpush1.msra.mxu0 %v1002
    %1004 = vmatprep.subr.mxu0 0.0
    %v1005 = vand.u32 %v89, 4294901760
    %1006 = vmatpush1.msra.mxu0 %v1005
    %1007 = vmatprep.subr.mxu0 0.0
    %v1008 = vand.u32 %v90, 4294901760
    %1009 = vmatpush1.msra.mxu0 %v1008
    %1010 = vmatprep.subr.mxu0 0.0
    %v1011 = vand.u32 %v91, 4294901760
    %1012 = vmatpush1.msra.mxu0 %v1011
    %1013 = vmatprep.subr.mxu0 0.0
    %v1014 = vand.u32 %v92, 4294901760
    %1015 = vmatpush1.msra.mxu0 %v1014
    %1016 = vmatprep.subr.mxu0 0.0
    %v1017 = vand.u32 %v93, 4294901760
    %1018 = vmatpush1.msra.mxu0 %v1017
    %1019 = vmatprep.subr.mxu0 0.0
    %v1020 = vand.u32 %v94, 4294901760
    %1021 = vmatpush1.msra.mxu0 %v1020
    %1022 = vmatprep.subr.mxu0 0.0
    %v1023 = vand.u32 %v95, 4294901760
    %1024 = vmatpush1.msra.mxu0 %v1023
    %1025 = vmatprep.subr.mxu0 0.0
    %v1026 = vand.u32 %v96, 4294901760
    %1027 = vmatpush1.msra.mxu0 %v1026
    %1028 = vmatprep.subr.mxu0 0.0
    %v1029 = vand.u32 %v97, 4294901760
    %1030 = vmatpush1.msra.mxu0 %v1029
    %1031 = vmatprep.subr.mxu0 0.0
    %v1032 = vand.u32 %v98, 4294901760
    %1033 = vmatpush1.msra.mxu0 %v1032
    %1034 = vmatprep.subr.mxu0 0.0
    %1035 = vmatpush1.msra.mxu0 0.0
    %1036 = vmatprep.subr.mxu0 0.0
    %1037 = vmatpush1.msra.mxu0 0.0
    %1038 = vmatprep.subr.mxu0 0.0
    %1039 = vmatpush1.msra.mxu0 0.0
    %1040 = vmatprep.subr.mxu0 0.0
    %1041 = vmatpush1.msra.mxu0 0.0
    %1042 = vmatprep.subr.mxu0 0.0
    %1043 = vmatpush1.msra.mxu0 0.0
    %1044 = vmatprep.subr.mxu0 0.0
    %1045 = vmatpush1.msra.mxu0 0.0
    %1046 = vmatprep.subr.mxu0 0.0
    %1047 = vmatpush1.msra.mxu0 0.0
    %1048 = vmatprep.subr.mxu0 0.0
    %1049 = vmatpush1.msra.mxu0 0.0
    %1050 = vmatprep.subr.mxu0 0.0
    %1051 = vmatpush1.msra.mxu0 0.0
    %1052 = vmatprep.subr.mxu0 0.0
    %1053 = vmatpush1.msra.mxu0 0.0
    %1054 = vmatprep.subr.mxu0 0.0
    %1055 = vmatpush1.msra.mxu0 0.0
    %1056 = vmatprep.subr.mxu0 0.0
    %1057 = vmatpush1.msra.mxu0 0.0
    %1058 = vmatprep.subr.mxu0 0.0
    %1059 = vmatpush1.msra.mxu0 0.0
    %1060 = vmatprep.subr.mxu0 0.0
    %1061 = vmatpush1.msra.mxu0 0.0
    %1062 = vmatprep.subr.mxu0 0.0
    %1063 = vmatpush1.msra.mxu0 0.0
    %1064 = vmatprep.subr.mxu0 0.0
    %1065 = vmatpush1.msra.mxu0 0.0
    %1066 = vmatprep.mubr.f32.mxu0 0.0
    %v1067 = vand.u32 %v73, 4294901760
    %1068 = vmatmul.mubr.f32.gmra.mrb[0].mxu0 %v1067
    %v1069 = vpop.f32.mrb[0].mxu0
    %v1070 = vadd.f32 %v929, %v1069
    %v1071 = vpop.f32.mrb[0].mxu0
    %1072 = vmatprep.mubr.f32.mxu0 0.0
    %v1073 = vand.u32 %v74, 4294901760
    %1074 = vmatmul.mubr.f32.gmra.mrb[0].mxu0 %v1073
    %v1075 = vpop.f32.mrb[0].mxu0
    %v1076 = vadd.f32 %v935, %v1075
    %v1077 = vpop.f32.mrb[0].mxu0
    %1078 = vmatprep.mubr.f32.mxu0 0.0
    %v1079 = vand.u32 %v75, 4294901760
    %1080 = vmatmul.mubr.f32.gmra.mrb[0].mxu0 %v1079
    %v1081 = vpop.f32.mrb[0].mxu0
    %v1082 = vadd.f32 %v941, %v1081
    %v1083 = vpop.f32.mrb[0].mxu0
    %1084 = vmatprep.mubr.f32.mxu0 0.0
    %v1085 = vand.u32 %v76, 4294901760
    %1086 = vmatmul.mubr.f32.gmra.mrb[0].mxu0 %v1085
    %v1087 = vpop.f32.mrb[0].mxu0
    %v1088 = vadd.f32 %v947, %v1087
    %v1089 = vpop.f32.mrb[0].mxu0
    %1090 = vmatprep.mubr.f32.mxu0 0.0
    %v1091 = vand.u32 %v77, 4294901760
    %1092 = vmatmul.mubr.f32.gmra.mrb[0].mxu0 %v1091
    %v1093 = vpop.f32.mrb[0].mxu0
    %v1094 = vadd.f32 %v953, %v1093
    %v1095 = vpop.f32.mrb[0].mxu0
    %1096 = vmatprep.mubr.f32.mxu0 0.0
    %v1097 = vand.u32 %v78, 4294901760
    %1098 = vmatmul.mubr.f32.gmra.mrb[0].mxu0 %v1097
    %v1099 = vpop.f32.mrb[0].mxu0
    %v1100 = vadd.f32 %v959, %v1099
    %v1101 = vpop.f32.mrb[0].mxu0
    %1102 = vmatprep.mubr.f32.mxu0 0.0
    %v1103 = vand.u32 %v79, 4294901760
    %1104 = vmatmul.mubr.f32.gmra.mrb[0].mxu0 %v1103
    %v1105 = vpop.f32.mrb[0].mxu0
    %v1106 = vadd.f32 %v965, %v1105
    %v1107 = vpop.f32.mrb[0].mxu0
    %1108 = vmatprep.mubr.f32.mxu0 0.0
    %v1109 = vand.u32 %v80, 4294901760
    %1110 = vmatmul.mubr.f32.gmra.mrb[0].mxu0 %v1109
    %v1111 = vpop.f32.mrb[0].mxu0
    %v1112 = vadd.f32 %v971, %v1111
    %v1113 = vpop.f32.mrb[0].mxu0
    %1114 = vmatprep.mubr.f32.mxu0 0.0
    %v1115 = vand.u32 %v81, 4294901760
    %1116 = vmatmul.mubr.f32.gmra.mrb[0].mxu0 %v1115
    %v1117 = vpop.f32.mrb[0].mxu0
    %v1118 = vadd.f32 %v977, %v1117
    %v1119 = vpop.f32.mrb[0].mxu0
    %1120 = vmatprep.mubr.f32.mxu0 0.0
    %v1121 = vand.u32 %v82, 4294901760
    %1122 = vmatmul.mubr.f32.gmra.mrb[0].mxu0 %v1121
    %v1123 = vpop.f32.mrb[0].mxu0
    %v1124 = vadd.f32 %v983, %v1123
    %v1125 = vpop.f32.mrb[0].mxu0
    %1126 = vdwg.mxu0
    %v1127 = vld [vmem:[#allocation2] sm:$0xff]
    %v1128 = vld [vmem:[#allocation2 + $0x8] sm:$0xff]
    %v1129 = vld [vmem:[#allocation2 + $0x10] sm:$0xff]
    %v1130 = vld [vmem:[#allocation2 + $0x18] sm:$0xff]
    %v1131 = vld [vmem:[#allocation2 + $0x20] sm:$0xff]
    %v1132 = vld [vmem:[#allocation2 + $0x28] sm:$0xff]
    %v1133 = vld [vmem:[#allocation2 + $0x30] sm:$0xff]
    %v1134 = vld [vmem:[#allocation2 + $0x38] sm:$0xff]
    %v1135 = vld [vmem:[#allocation2 + $0x40] sm:$0xff]
    %v1136 = vld [vmem:[#allocation2 + $0x48] sm:$0xff]
    %vm1137 = vcmask 654336
    %v1139 = vsel %vm1137, %v1127, 0
    %v1142 = vsel %vm1137, %v1128, 0
    %v1145 = vsel %vm1137, %v1129, 0
    %v1148 = vsel %vm1137, %v1130, 0
    %v1151 = vsel %vm1137, %v1131, 0
    %v1154 = vsel %vm1137, %v1132, 0
    %v1157 = vsel %vm1137, %v1133, 0
    %v1160 = vsel %vm1137, %v1134, 0
    %v1163 = vsel %vm1137, %v1135, 0
    %v1166 = vsel %vm1137, %v1136, 0
    %1168 = vmatprep.subr.mxu0 0.0
    %v1169 = vand.u32 %v1070, 4294901760
    %1170 = vmatpush1.msra.mxu0 %v1169
    %1171 = vmatprep.subr.mxu0 0.0
    %v1172 = vand.u32 %v1076, 4294901760
    %1173 = vmatpush1.msra.mxu0 %v1172
    %1174 = vmatprep.subr.mxu0 0.0
    %v1175 = vand.u32 %v1082, 4294901760
    %1176 = vmatpush1.msra.mxu0 %v1175
    %1177 = vmatprep.subr.mxu0 0.0
    %v1178 = vand.u32 %v1088, 4294901760
    %1179 = vmatpush1.msra.mxu0 %v1178
    %1180 = vmatprep.subr.mxu0 0.0
    %v1181 = vand.u32 %v1094, 4294901760
    %1182 = vmatpush1.msra.mxu0 %v1181
    %1183 = vmatprep.subr.mxu0 0.0
    %v1184 = vand.u32 %v1100, 4294901760
    %1185 = vmatpush1.msra.mxu0 %v1184
    %1186 = vmatprep.subr.mxu0 0.0
    %v1187 = vand.u32 %v1106, 4294901760
    %1188 = vmatpush1.msra.mxu0 %v1187
    %1189 = vmatprep.subr.mxu0 0.0
    %v1190 = vand.u32 %v1112, 4294901760
    %1191 = vmatpush1.msra.mxu0 %v1190
    %1192 = vmatprep.subr.mxu0 0.0
    %v1193 = vand.u32 %v1118, 4294901760
    %1194 = vmatpush1.msra.mxu0 %v1193
    %1195 = vmatprep.subr.mxu0 0.0
    %v1196 = vand.u32 %v1124, 4294901760
    %1197 = vmatpush1.msra.mxu0 %v1196
    %1198 = vmatprep.subr.mxu0 0.0
    %1199 = vmatpush1.msra.mxu0 0.0
    %1200 = vmatprep.subr.mxu0 0.0
    %1201 = vmatpush1.msra.mxu0 0.0
    %1202 = vmatprep.subr.mxu0 0.0
    %1203 = vmatpush1.msra.mxu0 0.0
    %1204 = vmatprep.subr.mxu0 0.0
    %1205 = vmatpush1.msra.mxu0 0.0
    %1206 = vmatprep.subr.mxu0 0.0
    %1207 = vmatpush1.msra.mxu0 0.0
    %1208 = vmatprep.subr.mxu0 0.0
    %1209 = vmatpush1.msra.mxu0 0.0
    %1210 = vmatprep.subr.mxu0 0.0
    %1211 = vmatpush1.msra.mxu0 0.0
    %1212 = vmatprep.subr.mxu0 0.0
    %1213 = vmatpush1.msra.mxu0 0.0
    %1214 = vmatprep.subr.mxu0 0.0
    %1215 = vmatpush1.msra.mxu0 0.0
    %1216 = vmatprep.subr.mxu0 0.0
    %1217 = vmatpush1.msra.mxu0 0.0
    %1218 = vmatprep.subr.mxu0 0.0
    %1219 = vmatpush1.msra.mxu0 0.0
    %1220 = vmatprep.subr.mxu0 0.0
    %1221 = vmatpush1.msra.mxu0 0.0
    %1222 = vmatprep.subr.mxu0 0.0
    %1223 = vmatpush1.msra.mxu0 0.0
    %1224 = vmatprep.subr.mxu0 0.0
    %1225 = vmatpush1.msra.mxu0 0.0
    %1226 = vmatprep.subr.mxu0 0.0
    %1227 = vmatpush1.msra.mxu0 0.0
    %1228 = vmatprep.subr.mxu0 0.0
    %1229 = vmatpush1.msra.mxu0 0.0
    %1230 = vmatprep.subr.mxu0 0.0
    %1231 = vmatpush1.msra.mxu0 0.0
    %1232 = vmatprep.subr.mxu0 0.0
    %1233 = vmatpush1.msra.mxu0 0.0
    %1234 = vmatprep.subr.mxu0 0.0
    %1235 = vmatpush1.msra.mxu0 0.0
    %1236 = vmatprep.subr.mxu0 0.0
    %1237 = vmatpush1.msra.mxu0 0.0
    %1238 = vmatprep.subr.mxu0 0.0
    %1239 = vmatpush1.msra.mxu0 0.0
    %1240 = vmatprep.subr.mxu0 0.0
    %1241 = vmatpush1.msra.mxu0 0.0
    %1242 = vmatprep.mubr.f32.mxu0 0.0
    %v1243 = vand.u32 %v1139, 4294901760
    %v1244 = vsub.f32 %v1139, %v1243
    %v1245 = vand.u32 %v1244, 4294901760
    %v1246 = vsub.f32 %v1244, %v1245
    %v1247 = vand.u32 %v1246, 4294901760
    %1248 = vmatmul.mubr.f32.gmra.mrb[0].mxu0 %v1247
    %v1249 = vpop.f32.mrb[0].mxu0
    %v1250 = vadd.f32 0.0, %v1249
    %v1251 = vpop.f32.mrb[0].mxu0
    %1252 = vmatprep.mubr.f32.mxu0 0.0
    %v1253 = vand.u32 %v1142, 4294901760
    %v1254 = vsub.f32 %v1142, %v1253
    %v1255 = vand.u32 %v1254, 4294901760
    %v1256 = vsub.f32 %v1254, %v1255
    %v1257 = vand.u32 %v1256, 4294901760
    %1258 = vmatmul.mubr.f32.gmra.mrb[0].mxu0 %v1257
    %v1259 = vpop.f32.mrb[0].mxu0
    %v1260 = vadd.f32 0.0, %v1259
    %v1261 = vpop.f32.mrb[0].mxu0
    %1262 = vmatprep.mubr.f32.mxu0 0.0
    %v1263 = vand.u32 %v1145, 4294901760
    %v1264 = vsub.f32 %v1145, %v1263
    %v1265 = vand.u32 %v1264, 4294901760
    %v1266 = vsub.f32 %v1264, %v1265
    %v1267 = vand.u32 %v1266, 4294901760
    %1268 = vmatmul.mubr.f32.gmra.mrb[0].mxu0 %v1267
    %v1269 = vpop.f32.mrb[0].mxu0
    %v1270 = vadd.f32 0.0, %v1269
    %v1271 = vpop.f32.mrb[0].mxu0
    %1272 = vmatprep.mubr.f32.mxu0 0.0
    %v1273 = vand.u32 %v1148, 4294901760
    %v1274 = vsub.f32 %v1148, %v1273
    %v1275 = vand.u32 %v1274, 4294901760
    %v1276 = vsub.f32 %v1274, %v1275
    %v1277 = vand.u32 %v1276, 4294901760
    %1278 = vmatmul.mubr.f32.gmra.mrb[0].mxu0 %v1277
    %v1279 = vpop.f32.mrb[0].mxu0
    %v1280 = vadd.f32 0.0, %v1279
    %v1281 = vpop.f32.mrb[0].mxu0
    %1282 = vmatprep.mubr.f32.mxu0 0.0
    %v1283 = vand.u32 %v1151, 4294901760
    %v1284 = vsub.f32 %v1151, %v1283
    %v1285 = vand.u32 %v1284, 4294901760
    %v1286 = vsub.f32 %v1284, %v1285
    %v1287 = vand.u32 %v1286, 4294901760
    %1288 = vmatmul.mubr.f32.gmra.mrb[0].mxu0 %v1287
    %v1289 = vpop.f32.mrb[0].mxu0
    %v1290 = vadd.f32 0.0, %v1289
    %v1291 = vpop.f32.mrb[0].mxu0
    %1292 = vmatprep.mubr.f32.mxu0 0.0
    %v1293 = vand.u32 %v1154, 4294901760
    %v1294 = vsub.f32 %v1154, %v1293
    %v1295 = vand.u32 %v1294, 4294901760
    %v1296 = vsub.f32 %v1294, %v1295
    %v1297 = vand.u32 %v1296, 4294901760
    %1298 = vmatmul.mubr.f32.gmra.mrb[0].mxu0 %v1297
    %v1299 = vpop.f32.mrb[0].mxu0
    %v1300 = vadd.f32 0.0, %v1299
    %v1301 = vpop.f32.mrb[0].mxu0
    %1302 = vmatprep.mubr.f32.mxu0 0.0
    %v1303 = vand.u32 %v1157, 4294901760
    %v1304 = vsub.f32 %v1157, %v1303
    %v1305 = vand.u32 %v1304, 4294901760
    %v1306 = vsub.f32 %v1304, %v1305
    %v1307 = vand.u32 %v1306, 4294901760
    %1308 = vmatmul.mubr.f32.gmra.mrb[0].mxu0 %v1307
    %v1309 = vpop.f32.mrb[0].mxu0
    %v1310 = vadd.f32 0.0, %v1309
    %v1311 = vpop.f32.mrb[0].mxu0
    %1312 = vmatprep.mubr.f32.mxu0 0.0
    %v1313 = vand.u32 %v1160, 4294901760
    %v1314 = vsub.f32 %v1160, %v1313
    %v1315 = vand.u32 %v1314, 4294901760
    %v1316 = vsub.f32 %v1314, %v1315
    %v1317 = vand.u32 %v1316, 4294901760
    %1318 = vmatmul.mubr.f32.gmra.mrb[0].mxu0 %v1317
    %v1319 = vpop.f32.mrb[0].mxu0
    %v1320 = vadd.f32 0.0, %v1319
    %v1321 = vpop.f32.mrb[0].mxu0
    %1322 = vmatprep.mubr.f32.mxu0 0.0
    %v1323 = vand.u32 %v1163, 4294901760
    %v1324 = vsub.f32 %v1163, %v1323
    %v1325 = vand.u32 %v1324, 4294901760
    %v1326 = vsub.f32 %v1324, %v1325
    %v1327 = vand.u32 %v1326, 4294901760
    %1328 = vmatmul.mubr.f32.gmra.mrb[0].mxu0 %v1327
    %v1329 = vpop.f32.mrb[0].mxu0
    %v1330 = vadd.f32 0.0, %v1329
    %v1331 = vpop.f32.mrb[0].mxu0
    %1332 = vmatprep.mubr.f32.mxu0 0.0
    %v1333 = vand.u32 %v1166, 4294901760
    %v1334 = vsub.f32 %v1166, %v1333
    %v1335 = vand.u32 %v1334, 4294901760
    %v1336 = vsub.f32 %v1334, %v1335
    %v1337 = vand.u32 %v1336, 4294901760
    %1338 = vmatmul.mubr.f32.gmra.mrb[0].mxu0 %v1337
    %v1339 = vpop.f32.mrb[0].mxu0
    %v1340 = vadd.f32 0.0, %v1339
    %v1341 = vpop.f32.mrb[0].mxu0
    %1342 = vdwg.mxu0
    %1343 = vmatprep.subr.mxu0 0.0
    %v1344 = vand.u32 %v1070, 4294901760
    %v1345 = vsub.f32 %v1070, %v1344
    %v1346 = vand.u32 %v1345, 4294901760
    %v1347 = vsub.f32 %v1345, %v1346
    %v1348 = vand.u32 %v1347, 4294901760
    %1349 = vmatpush1.msra.mxu0 %v1348
    %1350 = vmatprep.subr.mxu0 0.0
    %v1351 = vand.u32 %v1076, 4294901760
    %v1352 = vsub.f32 %v1076, %v1351
    %v1353 = vand.u32 %v1352, 4294901760
    %v1354 = vsub.f32 %v1352, %v1353
    %v1355 = vand.u32 %v1354, 4294901760
    %1356 = vmatpush1.msra.mxu0 %v1355
    %1357 = vmatprep.subr.mxu0 0.0
    %v1358 = vand.u32 %v1082, 4294901760
    %v1359 = vsub.f32 %v1082, %v1358
    %v1360 = vand.u32 %v1359, 4294901760
    %v1361 = vsub.f32 %v1359, %v1360
    %v1362 = vand.u32 %v1361, 4294901760
    %1363 = vmatpush1.msra.mxu0 %v1362
    %1364 = vmatprep.subr.mxu0 0.0
    %v1365 = vand.u32 %v1088, 4294901760
    %v1366 = vsub.f32 %v1088, %v1365
    %v1367 = vand.u32 %v1366, 4294901760
    %v1368 = vsub.f32 %v1366, %v1367
    %v1369 = vand.u32 %v1368, 4294901760
    %1370 = vmatpush1.msra.mxu0 %v1369
    %1371 = vmatprep.subr.mxu0 0.0
    %v1372 = vand.u32 %v1094, 4294901760
    %v1373 = vsub.f32 %v1094, %v1372
    %v1374 = vand.u32 %v1373, 4294901760
    %v1375 = vsub.f32 %v1373, %v1374
    %v1376 = vand.u32 %v1375, 4294901760
    %1377 = vmatpush1.msra.mxu0 %v1376
    %1378 = vmatprep.subr.mxu0 0.0
    %v1379 = vand.u32 %v1100, 4294901760
    %v1380 = vsub.f32 %v1100, %v1379
    %v1381 = vand.u32 %v1380, 4294901760
    %v1382 = vsub.f32 %v1380, %v1381
    %v1383 = vand.u32 %v1382, 4294901760
    %1384 = vmatpush1.msra.mxu0 %v1383
    %1385 = vmatprep.subr.mxu0 0.0
    %v1386 = vand.u32 %v1106, 4294901760
    %v1387 = vsub.f32 %v1106, %v1386
    %v1388 = vand.u32 %v1387, 4294901760
    %v1389 = vsub.f32 %v1387, %v1388
    %v1390 = vand.u32 %v1389, 4294901760
    %1391 = vmatpush1.msra.mxu0 %v1390
    %1392 = vmatprep.subr.mxu0 0.0
    %v1393 = vand.u32 %v1112, 4294901760
    %v1394 = vsub.f32 %v1112, %v1393
    %v1395 = vand.u32 %v1394, 4294901760
    %v1396 = vsub.f32 %v1394, %v1395
    %v1397 = vand.u32 %v1396, 4294901760
    %1398 = vmatpush1.msra.mxu0 %v1397
    %1399 = vmatprep.subr.mxu0 0.0
    %v1400 = vand.u32 %v1118, 4294901760
    %v1401 = vsub.f32 %v1118, %v1400
    %v1402 = vand.u32 %v1401, 4294901760
    %v1403 = vsub.f32 %v1401, %v1402
    %v1404 = vand.u32 %v1403, 4294901760
    %1405 = vmatpush1.msra.mxu0 %v1404
    %1406 = vmatprep.subr.mxu0 0.0
    %v1407 = vand.u32 %v1124, 4294901760
    %v1408 = vsub.f32 %v1124, %v1407
    %v1409 = vand.u32 %v1408, 4294901760
    %v1410 = vsub.f32 %v1408, %v1409
    %v1411 = vand.u32 %v1410, 4294901760
    %1412 = vmatpush1.msra.mxu0 %v1411
    %1413 = vmatprep.subr.mxu0 0.0
    %1414 = vmatpush1.msra.mxu0 0.0
    %1415 = vmatprep.subr.mxu0 0.0
    %1416 = vmatpush1.msra.mxu0 0.0
    %1417 = vmatprep.subr.mxu0 0.0
    %1418 = vmatpush1.msra.mxu0 0.0
    %1419 = vmatprep.subr.mxu0 0.0
    %1420 = vmatpush1.msra.mxu0 0.0
    %1421 = vmatprep.subr.mxu0 0.0
    %1422 = vmatpush1.msra.mxu0 0.0
    %1423 = vmatprep.subr.mxu0 0.0
    %1424 = vmatpush1.msra.mxu0 0.0
    %1425 = vmatprep.subr.mxu0 0.0
    %1426 = vmatpush1.msra.mxu0 0.0
    %1427 = vmatprep.subr.mxu0 0.0
    %1428 = vmatpush1.msra.mxu0 0.0
    %1429 = vmatprep.subr.mxu0 0.0
    %1430 = vmatpush1.msra.mxu0 0.0
    %1431 = vmatprep.subr.mxu0 0.0
    %1432 = vmatpush1.msra.mxu0 0.0
    %1433 = vmatprep.subr.mxu0 0.0
    %1434 = vmatpush1.msra.mxu0 0.0
    %1435 = vmatprep.subr.mxu0 0.0
    %1436 = vmatpush1.msra.mxu0 0.0
    %1437 = vmatprep.subr.mxu0 0.0
    %1438 = vmatpush1.msra.mxu0 0.0
    %1439 = vmatprep.subr.mxu0 0.0
    %1440 = vmatpush1.msra.mxu0 0.0
    %1441 = vmatprep.subr.mxu0 0.0
    %1442 = vmatpush1.msra.mxu0 0.0
    %1443 = vmatprep.subr.mxu0 0.0
    %1444 = vmatpush1.msra.mxu0 0.0
    %1445 = vmatprep.subr.mxu0 0.0
    %1446 = vmatpush1.msra.mxu0 0.0
    %1447 = vmatprep.subr.mxu0 0.0
    %1448 = vmatpush1.msra.mxu0 0.0
    %1449 = vmatprep.subr.mxu0 0.0
    %1450 = vmatpush1.msra.mxu0 0.0
    %1451 = vmatprep.subr.mxu0 0.0
    %1452 = vmatpush1.msra.mxu0 0.0
    %1453 = vmatprep.subr.mxu0 0.0
    %1454 = vmatpush1.msra.mxu0 0.0
    %1455 = vmatprep.subr.mxu0 0.0
    %1456 = vmatpush1.msra.mxu0 0.0
    %1457 = vmatprep.mubr.f32.mxu0 0.0
    %v1458 = vand.u32 %v1139, 4294901760
    %1459 = vmatmul.mubr.f32.gmra.mrb[0].mxu0 %v1458
    %v1460 = vpop.f32.mrb[0].mxu0
    %v1461 = vadd.f32 %v1250, %v1460
    %v1462 = vpop.f32.mrb[0].mxu0
    %1463 = vmatprep.mubr.f32.mxu0 0.0
    %v1464 = vand.u32 %v1142, 4294901760
    %1465 = vmatmul.mubr.f32.gmra.mrb[0].mxu0 %v1464
    %v1466 = vpop.f32.mrb[0].mxu0
    %v1467 = vadd.f32 %v1260, %v1466
    %v1468 = vpop.f32.mrb[0].mxu0
    %1469 = vmatprep.mubr.f32.mxu0 0.0
    %v1470 = vand.u32 %v1145, 4294901760
    %1471 = vmatmul.mubr.f32.gmra.mrb[0].mxu0 %v1470
    %v1472 = vpop.f32.mrb[0].mxu0
    %v1473 = vadd.f32 %v1270, %v1472
    %v1474 = vpop.f32.mrb[0].mxu0
    %1475 = vmatprep.mubr.f32.mxu0 0.0
    %v1476 = vand.u32 %v1148, 4294901760
    %1477 = vmatmul.mubr.f32.gmra.mrb[0].mxu0 %v1476
    %v1478 = vpop.f32.mrb[0].mxu0
    %v1479 = vadd.f32 %v1280, %v1478
    %v1480 = vpop.f32.mrb[0].mxu0
    %1481 = vmatprep.mubr.f32.mxu0 0.0
    %v1482 = vand.u32 %v1151, 4294901760
    %1483 = vmatmul.mubr.f32.gmra.mrb[0].mxu0 %v1482
    %v1484 = vpop.f32.mrb[0].mxu0
    %v1485 = vadd.f32 %v1290, %v1484
    %v1486 = vpop.f32.mrb[0].mxu0
    %1487 = vmatprep.mubr.f32.mxu0 0.0
    %v1488 = vand.u32 %v1154, 4294901760
    %1489 = vmatmul.mubr.f32.gmra.mrb[0].mxu0 %v1488
    %v1490 = vpop.f32.mrb[0].mxu0
    %v1491 = vadd.f32 %v1300, %v1490
    %v1492 = vpop.f32.mrb[0].mxu0
    %1493 = vmatprep.mubr.f32.mxu0 0.0
    %v1494 = vand.u32 %v1157, 4294901760
    %1495 = vmatmul.mubr.f32.gmra.mrb[0].mxu0 %v1494
    %v1496 = vpop.f32.mrb[0].mxu0
    %v1497 = vadd.f32 %v1310, %v1496
    %v1498 = vpop.f32.mrb[0].mxu0
    %1499 = vmatprep.mubr.f32.mxu0 0.0
    %v1500 = vand.u32 %v1160, 4294901760
    %1501 = vmatmul.mubr.f32.gmra.mrb[0].mxu0 %v1500
    %v1502 = vpop.f32.mrb[0].mxu0
    %v1503 = vadd.f32 %v1320, %v1502
    %v1504 = vpop.f32.mrb[0].mxu0
    %1505 = vmatprep.mubr.f32.mxu0 0.0
    %v1506 = vand.u32 %v1163, 4294901760
    %1507 = vmatmul.mubr.f32.gmra.mrb[0].mxu0 %v1506
    %v1508 = vpop.f32.mrb[0].mxu0
    %v1509 = vadd.f32 %v1330, %v1508
    %v1510 = vpop.f32.mrb[0].mxu0
    %1511 = vmatprep.mubr.f32.mxu0 0.0
    %v1512 = vand.u32 %v1166, 4294901760
    %1513 = vmatmul.mubr.f32.gmra.mrb[0].mxu0 %v1512
    %v1514 = vpop.f32.mrb[0].mxu0
    %v1515 = vadd.f32 %v1340, %v1514
    %v1516 = vpop.f32.mrb[0].mxu0
    %1517 = vdwg.mxu0
    %1518 = vmatprep.subr.mxu0 0.0
    %v1519 = vand.u32 %v1070, 4294901760
    %v1520 = vsub.f32 %v1070, %v1519
    %1521 = vmatpush1.msra.mxu0 %v1520
    %1522 = vmatprep.subr.mxu0 0.0
    %v1523 = vand.u32 %v1076, 4294901760
    %v1524 = vsub.f32 %v1076, %v1523
    %1525 = vmatpush1.msra.mxu0 %v1524
    %1526 = vmatprep.subr.mxu0 0.0
    %v1527 = vand.u32 %v1082, 4294901760
    %v1528 = vsub.f32 %v1082, %v1527
    %1529 = vmatpush1.msra.mxu0 %v1528
    %1530 = vmatprep.subr.mxu0 0.0
    %v1531 = vand.u32 %v1088, 4294901760
    %v1532 = vsub.f32 %v1088, %v1531
    %1533 = vmatpush1.msra.mxu0 %v1532
    %1534 = vmatprep.subr.mxu0 0.0
    %v1535 = vand.u32 %v1094, 4294901760
    %v1536 = vsub.f32 %v1094, %v1535
    %1537 = vmatpush1.msra.mxu0 %v1536
    %1538 = vmatprep.subr.mxu0 0.0
    %v1539 = vand.u32 %v1100, 4294901760
    %v1540 = vsub.f32 %v1100, %v1539
    %1541 = vmatpush1.msra.mxu0 %v1540
    %1542 = vmatprep.subr.mxu0 0.0
    %v1543 = vand.u32 %v1106, 4294901760
    %v1544 = vsub.f32 %v1106, %v1543
    %1545 = vmatpush1.msra.mxu0 %v1544
    %1546 = vmatprep.subr.mxu0 0.0
    %v1547 = vand.u32 %v1112, 4294901760
    %v1548 = vsub.f32 %v1112, %v1547
    %1549 = vmatpush1.msra.mxu0 %v1548
    %1550 = vmatprep.subr.mxu0 0.0
    %v1551 = vand.u32 %v1118, 4294901760
    %v1552 = vsub.f32 %v1118, %v1551
    %1553 = vmatpush1.msra.mxu0 %v1552
    %1554 = vmatprep.subr.mxu0 0.0
    %v1555 = vand.u32 %v1124, 4294901760
    %v1556 = vsub.f32 %v1124, %v1555
    %1557 = vmatpush1.msra.mxu0 %v1556
    %1558 = vmatprep.subr.mxu0 0.0
    %1559 = vmatpush1.msra.mxu0 0.0
    %1560 = vmatprep.subr.mxu0 0.0
    %1561 = vmatpush1.msra.mxu0 0.0
    %1562 = vmatprep.subr.mxu0 0.0
    %1563 = vmatpush1.msra.mxu0 0.0
    %1564 = vmatprep.subr.mxu0 0.0
    %1565 = vmatpush1.msra.mxu0 0.0
    %1566 = vmatprep.subr.mxu0 0.0
    %1567 = vmatpush1.msra.mxu0 0.0
    %1568 = vmatprep.subr.mxu0 0.0
    %1569 = vmatpush1.msra.mxu0 0.0
    %1570 = vmatprep.subr.mxu0 0.0
    %1571 = vmatpush1.msra.mxu0 0.0
    %1572 = vmatprep.subr.mxu0 0.0
    %1573 = vmatpush1.msra.mxu0 0.0
    %1574 = vmatprep.subr.mxu0 0.0
    %1575 = vmatpush1.msra.mxu0 0.0
    %1576 = vmatprep.subr.mxu0 0.0
    %1577 = vmatpush1.msra.mxu0 0.0
    %1578 = vmatprep.subr.mxu0 0.0
    %1579 = vmatpush1.msra.mxu0 0.0
    %1580 = vmatprep.subr.mxu0 0.0
    %1581 = vmatpush1.msra.mxu0 0.0
    %1582 = vmatprep.subr.mxu0 0.0
    %1583 = vmatpush1.msra.mxu0 0.0
    %1584 = vmatprep.subr.mxu0 0.0
    %1585 = vmatpush1.msra.mxu0 0.0
    %1586 = vmatprep.subr.mxu0 0.0
    %1587 = vmatpush1.msra.mxu0 0.0
    %1588 = vmatprep.subr.mxu0 0.0
    %1589 = vmatpush1.msra.mxu0 0.0
    %1590 = vmatprep.subr.mxu0 0.0
    %1591 = vmatpush1.msra.mxu0 0.0
    %1592 = vmatprep.subr.mxu0 0.0
    %1593 = vmatpush1.msra.mxu0 0.0
    %1594 = vmatprep.subr.mxu0 0.0
    %1595 = vmatpush1.msra.mxu0 0.0
    %1596 = vmatprep.subr.mxu0 0.0
    %1597 = vmatpush1.msra.mxu0 0.0
    %1598 = vmatprep.subr.mxu0 0.0
    %1599 = vmatpush1.msra.mxu0 0.0
    %1600 = vmatprep.subr.mxu0 0.0
    %1601 = vmatpush1.msra.mxu0 0.0
    %1602 = vmatprep.mubr.f32.mxu0 0.0
    %v1603 = vand.u32 %v1139, 4294901760
    %v1604 = vsub.f32 %v1139, %v1603
    %1605 = vmatmul.mubr.f32.gmra.mrb[0].mxu0 %v1604
    %v1606 = vpop.f32.mrb[0].mxu0
    %v1607 = vadd.f32 %v1461, %v1606
    %v1608 = vpop.f32.mrb[0].mxu0
    %1609 = vmatprep.mubr.f32.mxu0 0.0
    %v1610 = vand.u32 %v1142, 4294901760
    %v1611 = vsub.f32 %v1142, %v1610
    %1612 = vmatmul.mubr.f32.gmra.mrb[0].mxu0 %v1611
    %v1613 = vpop.f32.mrb[0].mxu0
    %v1614 = vadd.f32 %v1467, %v1613
    %v1615 = vpop.f32.mrb[0].mxu0
    %1616 = vmatprep.mubr.f32.mxu0 0.0
    %v1617 = vand.u32 %v1145, 4294901760
    %v1618 = vsub.f32 %v1145, %v1617
    %1619 = vmatmul.mubr.f32.gmra.mrb[0].mxu0 %v1618
    %v1620 = vpop.f32.mrb[0].mxu0
    %v1621 = vadd.f32 %v1473, %v1620
    %v1622 = vpop.f32.mrb[0].mxu0
    %1623 = vmatprep.mubr.f32.mxu0 0.0
    %v1624 = vand.u32 %v1148, 4294901760
    %v1625 = vsub.f32 %v1148, %v1624
    %1626 = vmatmul.mubr.f32.gmra.mrb[0].mxu0 %v1625
    %v1627 = vpop.f32.mrb[0].mxu0
    %v1628 = vadd.f32 %v1479, %v1627
    %v1629 = vpop.f32.mrb[0].mxu0
    %1630 = vmatprep.mubr.f32.mxu0 0.0
    %v1631 = vand.u32 %v1151, 4294901760
    %v1632 = vsub.f32 %v1151, %v1631
    %1633 = vmatmul.mubr.f32.gmra.mrb[0].mxu0 %v1632
    %v1634 = vpop.f32.mrb[0].mxu0
    %v1635 = vadd.f32 %v1485, %v1634
    %v1636 = vpop.f32.mrb[0].mxu0
    %1637 = vmatprep.mubr.f32.mxu0 0.0
    %v1638 = vand.u32 %v1154, 4294901760
    %v1639 = vsub.f32 %v1154, %v1638
    %1640 = vmatmul.mubr.f32.gmra.mrb[0].mxu0 %v1639
    %v1641 = vpop.f32.mrb[0].mxu0
    %v1642 = vadd.f32 %v1491, %v1641
    %v1643 = vpop.f32.mrb[0].mxu0
    %1644 = vmatprep.mubr.f32.mxu0 0.0
    %v1645 = vand.u32 %v1157, 4294901760
    %v1646 = vsub.f32 %v1157, %v1645
    %1647 = vmatmul.mubr.f32.gmra.mrb[0].mxu0 %v1646
    %v1648 = vpop.f32.mrb[0].mxu0
    %v1649 = vadd.f32 %v1497, %v1648
    %v1650 = vpop.f32.mrb[0].mxu0
    %1651 = vmatprep.mubr.f32.mxu0 0.0
    %v1652 = vand.u32 %v1160, 4294901760
    %v1653 = vsub.f32 %v1160, %v1652
    %1654 = vmatmul.mubr.f32.gmra.mrb[0].mxu0 %v1653
    %v1655 = vpop.f32.mrb[0].mxu0
    %v1656 = vadd.f32 %v1503, %v1655
    %v1657 = vpop.f32.mrb[0].mxu0
    %1658 = vmatprep.mubr.f32.mxu0 0.0
    %v1659 = vand.u32 %v1163, 4294901760
    %v1660 = vsub.f32 %v1163, %v1659
    %1661 = vmatmul.mubr.f32.gmra.mrb[0].mxu0 %v1660
    %v1662 = vpop.f32.mrb[0].mxu0
    %v1663 = vadd.f32 %v1509, %v1662
    %v1664 = vpop.f32.mrb[0].mxu0
    %1665 = vmatprep.mubr.f32.mxu0 0.0
    %v1666 = vand.u32 %v1166, 4294901760
    %v1667 = vsub.f32 %v1166, %v1666
    %1668 = vmatmul.mubr.f32.gmra.mrb[0].mxu0 %v1667
    %v1669 = vpop.f32.mrb[0].mxu0
    %v1670 = vadd.f32 %v1515, %v1669
    %v1671 = vpop.f32.mrb[0].mxu0
    %1672 = vdwg.mxu0
    %1673 = vmatprep.subr.mxu0 0.0
    %v1674 = vand.u32 %v1070, 4294901760
    %1675 = vmatpush1.msra.mxu0 %v1674
    %1676 = vmatprep.subr.mxu0 0.0
    %v1677 = vand.u32 %v1076, 4294901760
    %1678 = vmatpush1.msra.mxu0 %v1677
    %1679 = vmatprep.subr.mxu0 0.0
    %v1680 = vand.u32 %v1082, 4294901760
    %1681 = vmatpush1.msra.mxu0 %v1680
    %1682 = vmatprep.subr.mxu0 0.0
    %v1683 = vand.u32 %v1088, 4294901760
    %1684 = vmatpush1.msra.mxu0 %v1683
    %1685 = vmatprep.subr.mxu0 0.0
    %v1686 = vand.u32 %v1094, 4294901760
    %1687 = vmatpush1.msra.mxu0 %v1686
    %1688 = vmatprep.subr.mxu0 0.0
    %v1689 = vand.u32 %v1100, 4294901760
    %1690 = vmatpush1.msra.mxu0 %v1689
    %1691 = vmatprep.subr.mxu0 0.0
    %v1692 = vand.u32 %v1106, 4294901760
    %1693 = vmatpush1.msra.mxu0 %v1692
    %1694 = vmatprep.subr.mxu0 0.0
    %v1695 = vand.u32 %v1112, 4294901760
    %1696 = vmatpush1.msra.mxu0 %v1695
    %1697 = vmatprep.subr.mxu0 0.0
    %v1698 = vand.u32 %v1118, 4294901760
    %1699 = vmatpush1.msra.mxu0 %v1698
    %1700 = vmatprep.subr.mxu0 0.0
    %v1701 = vand.u32 %v1124, 4294901760
    %1702 = vmatpush1.msra.mxu0 %v1701
    %1703 = vmatprep.subr.mxu0 0.0
    %1704 = vmatpush1.msra.mxu0 0.0
    %1705 = vmatprep.subr.mxu0 0.0
    %1706 = vmatpush1.msra.mxu0 0.0
    %1707 = vmatprep.subr.mxu0 0.0
    %1708 = vmatpush1.msra.mxu0 0.0
    %1709 = vmatprep.subr.mxu0 0.0
    %1710 = vmatpush1.msra.mxu0 0.0
    %1711 = vmatprep.subr.mxu0 0.0
    %1712 = vmatpush1.msra.mxu0 0.0
    %1713 = vmatprep.subr.mxu0 0.0
    %1714 = vmatpush1.msra.mxu0 0.0
    %1715 = vmatprep.subr.mxu0 0.0
    %1716 = vmatpush1.msra.mxu0 0.0
    %1717 = vmatprep.subr.mxu0 0.0
    %1718 = vmatpush1.msra.mxu0 0.0
    %1719 = vmatprep.subr.mxu0 0.0
    %1720 = vmatpush1.msra.mxu0 0.0
    %1721 = vmatprep.subr.mxu0 0.0
    %1722 = vmatpush1.msra.mxu0 0.0
    %1723 = vmatprep.subr.mxu0 0.0
    %1724 = vmatpush1.msra.mxu0 0.0
    %1725 = vmatprep.subr.mxu0 0.0
    %1726 = vmatpush1.msra.mxu0 0.0
    %1727 = vmatprep.subr.mxu0 0.0
    %1728 = vmatpush1.msra.mxu0 0.0
    %1729 = vmatprep.subr.mxu0 0.0
    %1730 = vmatpush1.msra.mxu0 0.0
    %1731 = vmatprep.subr.mxu0 0.0
    %1732 = vmatpush1.msra.mxu0 0.0
    %1733 = vmatprep.subr.mxu0 0.0
    %1734 = vmatpush1.msra.mxu0 0.0
    %1735 = vmatprep.subr.mxu0 0.0
    %1736 = vmatpush1.msra.mxu0 0.0
    %1737 = vmatprep.subr.mxu0 0.0
    %1738 = vmatpush1.msra.mxu0 0.0
    %1739 = vmatprep.subr.mxu0 0.0
    %1740 = vmatpush1.msra.mxu0 0.0
    %1741 = vmatprep.subr.mxu0 0.0
    %1742 = vmatpush1.msra.mxu0 0.0
    %1743 = vmatprep.subr.mxu0 0.0
    %1744 = vmatpush1.msra.mxu0 0.0
    %1745 = vmatprep.subr.mxu0 0.0
    %1746 = vmatpush1.msra.mxu0 0.0
    %1747 = vmatprep.mubr.f32.mxu0 0.0
    %v1748 = vand.u32 %v1139, 4294901760
    %v1749 = vsub.f32 %v1139, %v1748
    %v1750 = vand.u32 %v1749, 4294901760
    %1751 = vmatmul.mubr.f32.gmra.mrb[0].mxu0 %v1750
    %v1752 = vpop.f32.mrb[0].mxu0
    %v1753 = vadd.f32 %v1607, %v1752
    %v1754 = vpop.f32.mrb[0].mxu0
    %1755 = vmatprep.mubr.f32.mxu0 0.0
    %v1756 = vand.u32 %v1142, 4294901760
    %v1757 = vsub.f32 %v1142, %v1756
    %v1758 = vand.u32 %v1757, 4294901760
    %1759 = vmatmul.mubr.f32.gmra.mrb[0].mxu0 %v1758
    %v1760 = vpop.f32.mrb[0].mxu0
    %v1761 = vadd.f32 %v1614, %v1760
    %v1762 = vpop.f32.mrb[0].mxu0
    %1763 = vmatprep.mubr.f32.mxu0 0.0
    %v1764 = vand.u32 %v1145, 4294901760
    %v1765 = vsub.f32 %v1145, %v1764
    %v1766 = vand.u32 %v1765, 4294901760
    %1767 = vmatmul.mubr.f32.gmra.mrb[0].mxu0 %v1766
    %v1768 = vpop.f32.mrb[0].mxu0
    %v1769 = vadd.f32 %v1621, %v1768
    %v1770 = vpop.f32.mrb[0].mxu0
    %1771 = vmatprep.mubr.f32.mxu0 0.0
    %v1772 = vand.u32 %v1148, 4294901760
    %v1773 = vsub.f32 %v1148, %v1772
    %v1774 = vand.u32 %v1773, 4294901760
    %1775 = vmatmul.mubr.f32.gmra.mrb[0].mxu0 %v1774
    %v1776 = vpop.f32.mrb[0].mxu0
    %v1777 = vadd.f32 %v1628, %v1776
    %v1778 = vpop.f32.mrb[0].mxu0
    %1779 = vmatprep.mubr.f32.mxu0 0.0
    %v1780 = vand.u32 %v1151, 4294901760
    %v1781 = vsub.f32 %v1151, %v1780
    %v1782 = vand.u32 %v1781, 4294901760
    %1783 = vmatmul.mubr.f32.gmra.mrb[0].mxu0 %v1782
    %v1784 = vpop.f32.mrb[0].mxu0
    %v1785 = vadd.f32 %v1635, %v1784
    %v1786 = vpop.f32.mrb[0].mxu0
    %1787 = vmatprep.mubr.f32.mxu0 0.0
    %v1788 = vand.u32 %v1154, 4294901760
    %v1789 = vsub.f32 %v1154, %v1788
    %v1790 = vand.u32 %v1789, 4294901760
    %1791 = vmatmul.mubr.f32.gmra.mrb[0].mxu0 %v1790
    %v1792 = vpop.f32.mrb[0].mxu0
    %v1793 = vadd.f32 %v1642, %v1792
    %v1794 = vpop.f32.mrb[0].mxu0
    %1795 = vmatprep.mubr.f32.mxu0 0.0
    %v1796 = vand.u32 %v1157, 4294901760
    %v1797 = vsub.f32 %v1157, %v1796
    %v1798 = vand.u32 %v1797, 4294901760
    %1799 = vmatmul.mubr.f32.gmra.mrb[0].mxu0 %v1798
    %v1800 = vpop.f32.mrb[0].mxu0
    %v1801 = vadd.f32 %v1649, %v1800
    %v1802 = vpop.f32.mrb[0].mxu0
    %1803 = vmatprep.mubr.f32.mxu0 0.0
    %v1804 = vand.u32 %v1160, 4294901760
    %v1805 = vsub.f32 %v1160, %v1804
    %v1806 = vand.u32 %v1805, 4294901760
    %1807 = vmatmul.mubr.f32.gmra.mrb[0].mxu0 %v1806
    %v1808 = vpop.f32.mrb[0].mxu0
    %v1809 = vadd.f32 %v1656, %v1808
    %v1810 = vpop.f32.mrb[0].mxu0
    %1811 = vmatprep.mubr.f32.mxu0 0.0
    %v1812 = vand.u32 %v1163, 4294901760
    %v1813 = vsub.f32 %v1163, %v1812
    %v1814 = vand.u32 %v1813, 4294901760
    %1815 = vmatmul.mubr.f32.gmra.mrb[0].mxu0 %v1814
    %v1816 = vpop.f32.mrb[0].mxu0
    %v1817 = vadd.f32 %v1663, %v1816
    %v1818 = vpop.f32.mrb[0].mxu0
    %1819 = vmatprep.mubr.f32.mxu0 0.0
    %v1820 = vand.u32 %v1166, 4294901760
    %v1821 = vsub.f32 %v1166, %v1820
    %v1822 = vand.u32 %v1821, 4294901760
    %1823 = vmatmul.mubr.f32.gmra.mrb[0].mxu0 %v1822
    %v1824 = vpop.f32.mrb[0].mxu0
    %v1825 = vadd.f32 %v1670, %v1824
    %v1826 = vpop.f32.mrb[0].mxu0
    %1827 = vdwg.mxu0
    %1828 = vmatprep.subr.mxu0 0.0
    %v1829 = vand.u32 %v1070, 4294901760
    %v1830 = vsub.f32 %v1070, %v1829
    %v1831 = vand.u32 %v1830, 4294901760
    %1832 = vmatpush1.msra.mxu0 %v1831
    %1833 = vmatprep.subr.mxu0 0.0
    %v1834 = vand.u32 %v1076, 4294901760
    %v1835 = vsub.f32 %v1076, %v1834
    %v1836 = vand.u32 %v1835, 4294901760
    %1837 = vmatpush1.msra.mxu0 %v1836
    %1838 = vmatprep.subr.mxu0 0.0
    %v1839 = vand.u32 %v1082, 4294901760
    %v1840 = vsub.f32 %v1082, %v1839
    %v1841 = vand.u32 %v1840, 4294901760
    %1842 = vmatpush1.msra.mxu0 %v1841
    %1843 = vmatprep.subr.mxu0 0.0
    %v1844 = vand.u32 %v1088, 4294901760
    %v1845 = vsub.f32 %v1088, %v1844
    %v1846 = vand.u32 %v1845, 4294901760
    %1847 = vmatpush1.msra.mxu0 %v1846
    %1848 = vmatprep.subr.mxu0 0.0
    %v1849 = vand.u32 %v1094, 4294901760
    %v1850 = vsub.f32 %v1094, %v1849
    %v1851 = vand.u32 %v1850, 4294901760
    %1852 = vmatpush1.msra.mxu0 %v1851
    %1853 = vmatprep.subr.mxu0 0.0
    %v1854 = vand.u32 %v1100, 4294901760
    %v1855 = vsub.f32 %v1100, %v1854
    %v1856 = vand.u32 %v1855, 4294901760
    %1857 = vmatpush1.msra.mxu0 %v1856
    %1858 = vmatprep.subr.mxu0 0.0
    %v1859 = vand.u32 %v1106, 4294901760
    %v1860 = vsub.f32 %v1106, %v1859
    %v1861 = vand.u32 %v1860, 4294901760
    %1862 = vmatpush1.msra.mxu0 %v1861
    %1863 = vmatprep.subr.mxu0 0.0
    %v1864 = vand.u32 %v1112, 4294901760
    %v1865 = vsub.f32 %v1112, %v1864
    %v1866 = vand.u32 %v1865, 4294901760
    %1867 = vmatpush1.msra.mxu0 %v1866
    %1868 = vmatprep.subr.mxu0 0.0
    %v1869 = vand.u32 %v1118, 4294901760
    %v1870 = vsub.f32 %v1118, %v1869
    %v1871 = vand.u32 %v1870, 4294901760
    %1872 = vmatpush1.msra.mxu0 %v1871
    %1873 = vmatprep.subr.mxu0 0.0
    %v1874 = vand.u32 %v1124, 4294901760
    %v1875 = vsub.f32 %v1124, %v1874
    %v1876 = vand.u32 %v1875, 4294901760
    %1877 = vmatpush1.msra.mxu0 %v1876
    %1878 = vmatprep.subr.mxu0 0.0
    %1879 = vmatpush1.msra.mxu0 0.0
    %1880 = vmatprep.subr.mxu0 0.0
    %1881 = vmatpush1.msra.mxu0 0.0
    %1882 = vmatprep.subr.mxu0 0.0
    %1883 = vmatpush1.msra.mxu0 0.0
    %1884 = vmatprep.subr.mxu0 0.0
    %1885 = vmatpush1.msra.mxu0 0.0
    %1886 = vmatprep.subr.mxu0 0.0
    %1887 = vmatpush1.msra.mxu0 0.0
    %1888 = vmatprep.subr.mxu0 0.0
    %1889 = vmatpush1.msra.mxu0 0.0
    %1890 = vmatprep.subr.mxu0 0.0
    %1891 = vmatpush1.msra.mxu0 0.0
    %1892 = vmatprep.subr.mxu0 0.0
    %1893 = vmatpush1.msra.mxu0 0.0
    %1894 = vmatprep.subr.mxu0 0.0
    %1895 = vmatpush1.msra.mxu0 0.0
    %1896 = vmatprep.subr.mxu0 0.0
    %1897 = vmatpush1.msra.mxu0 0.0
    %1898 = vmatprep.subr.mxu0 0.0
    %1899 = vmatpush1.msra.mxu0 0.0
    %1900 = vmatprep.subr.mxu0 0.0
    %1901 = vmatpush1.msra.mxu0 0.0
    %1902 = vmatprep.subr.mxu0 0.0
    %1903 = vmatpush1.msra.mxu0 0.0
    %1904 = vmatprep.subr.mxu0 0.0
    %1905 = vmatpush1.msra.mxu0 0.0
    %1906 = vmatprep.subr.mxu0 0.0
    %1907 = vmatpush1.msra.mxu0 0.0
    %1908 = vmatprep.subr.mxu0 0.0
    %1909 = vmatpush1.msra.mxu0 0.0
    %1910 = vmatprep.subr.mxu0 0.0
    %1911 = vmatpush1.msra.mxu0 0.0
    %1912 = vmatprep.subr.mxu0 0.0
    %1913 = vmatpush1.msra.mxu0 0.0
    %1914 = vmatprep.subr.mxu0 0.0
    %1915 = vmatpush1.msra.mxu0 0.0
    %1916 = vmatprep.subr.mxu0 0.0
    %1917 = vmatpush1.msra.mxu0 0.0
    %1918 = vmatprep.subr.mxu0 0.0
    %1919 = vmatpush1.msra.mxu0 0.0
    %1920 = vmatprep.subr.mxu0 0.0
    %1921 = vmatpush1.msra.mxu0 0.0
    %1922 = vmatprep.mubr.f32.mxu0 0.0
    %v1923 = vand.u32 %v1139, 4294901760
    %1924 = vmatmul.mubr.f32.gmra.mrb[0].mxu0 %v1923
    %v1925 = vpop.f32.mrb[0].mxu0
    %v1926 = vadd.f32 %v1753, %v1925
    %v1927 = vpop.f32.mrb[0].mxu0
    %1928 = vmatprep.mubr.f32.mxu0 0.0
    %v1929 = vand.u32 %v1142, 4294901760
    %1930 = vmatmul.mubr.f32.gmra.mrb[0].mxu0 %v1929
    %v1931 = vpop.f32.mrb[0].mxu0
    %v1932 = vadd.f32 %v1761, %v1931
    %v1933 = vpop.f32.mrb[0].mxu0
    %1934 = vmatprep.mubr.f32.mxu0 0.0
    %v1935 = vand.u32 %v1145, 4294901760
    %1936 = vmatmul.mubr.f32.gmra.mrb[0].mxu0 %v1935
    %v1937 = vpop.f32.mrb[0].mxu0
    %v1938 = vadd.f32 %v1769, %v1937
    %v1939 = vpop.f32.mrb[0].mxu0
    %1940 = vmatprep.mubr.f32.mxu0 0.0
    %v1941 = vand.u32 %v1148, 4294901760
    %1942 = vmatmul.mubr.f32.gmra.mrb[0].mxu0 %v1941
    %v1943 = vpop.f32.mrb[0].mxu0
    %v1944 = vadd.f32 %v1777, %v1943
    %v1945 = vpop.f32.mrb[0].mxu0
    %1946 = vmatprep.mubr.f32.mxu0 0.0
    %v1947 = vand.u32 %v1151, 4294901760
    %1948 = vmatmul.mubr.f32.gmra.mrb[0].mxu0 %v1947
    %v1949 = vpop.f32.mrb[0].mxu0
    %v1950 = vadd.f32 %v1785, %v1949
    %v1951 = vpop.f32.mrb[0].mxu0
    %1952 = vmatprep.mubr.f32.mxu0 0.0
    %v1953 = vand.u32 %v1154, 4294901760
    %1954 = vmatmul.mubr.f32.gmra.mrb[0].mxu0 %v1953
    %v1955 = vpop.f32.mrb[0].mxu0
    %v1956 = vadd.f32 %v1793, %v1955
    %v1957 = vpop.f32.mrb[0].mxu0
    %1958 = vmatprep.mubr.f32.mxu0 0.0
    %v1959 = vand.u32 %v1157, 4294901760
    %1960 = vmatmul.mubr.f32.gmra.mrb[0].mxu0 %v1959
    %v1961 = vpop.f32.mrb[0].mxu0
    %v1962 = vadd.f32 %v1801, %v1961
    %v1963 = vpop.f32.mrb[0].mxu0
    %1964 = vmatprep.mubr.f32.mxu0 0.0
    %v1965 = vand.u32 %v1160, 4294901760
    %1966 = vmatmul.mubr.f32.gmra.mrb[0].mxu0 %v1965
    %v1967 = vpop.f32.mrb[0].mxu0
    %v1968 = vadd.f32 %v1809, %v1967
    %v1969 = vpop.f32.mrb[0].mxu0
    %1970 = vmatprep.mubr.f32.mxu0 0.0
    %v1971 = vand.u32 %v1163, 4294901760
    %1972 = vmatmul.mubr.f32.gmra.mrb[0].mxu0 %v1971
    %v1973 = vpop.f32.mrb[0].mxu0
    %v1974 = vadd.f32 %v1817, %v1973
    %v1975 = vpop.f32.mrb[0].mxu0
    %1976 = vmatprep.mubr.f32.mxu0 0.0
    %v1977 = vand.u32 %v1166, 4294901760
    %1978 = vmatmul.mubr.f32.gmra.mrb[0].mxu0 %v1977
    %v1979 = vpop.f32.mrb[0].mxu0
    %v1980 = vadd.f32 %v1825, %v1979
    %v1981 = vpop.f32.mrb[0].mxu0
    %1982 = vdwg.mxu0
    %1983 = vmatprep.subr.mxu0 0.0
    %v1984 = vand.u32 %v1070, 4294901760
    %1985 = vmatpush1.msra.mxu0 %v1984
    %1986 = vmatprep.subr.mxu0 0.0
    %v1987 = vand.u32 %v1076, 4294901760
    %1988 = vmatpush1.msra.mxu0 %v1987
    %1989 = vmatprep.subr.mxu0 0.0
    %v1990 = vand.u32 %v1082, 4294901760
    %1991 = vmatpush1.msra.mxu0 %v1990
    %1992 = vmatprep.subr.mxu0 0.0
    %v1993 = vand.u32 %v1088, 4294901760
    %1994 = vmatpush1.msra.mxu0 %v1993
    %1995 = vmatprep.subr.mxu0 0.0
    %v1996 = vand.u32 %v1094, 4294901760
    %1997 = vmatpush1.msra.mxu0 %v1996
    %1998 = vmatprep.subr.mxu0 0.0
    %v1999 = vand.u32 %v1100, 4294901760
    %2000 = vmatpush1.msra.mxu0 %v1999
    %2001 = vmatprep.subr.mxu0 0.0
    %v2002 = vand.u32 %v1106, 4294901760
    %2003 = vmatpush1.msra.mxu0 %v2002
    %2004 = vmatprep.subr.mxu0 0.0
    %v2005 = vand.u32 %v1112, 4294901760
    %2006 = vmatpush1.msra.mxu0 %v2005
    %2007 = vmatprep.subr.mxu0 0.0
    %v2008 = vand.u32 %v1118, 4294901760
    %2009 = vmatpush1.msra.mxu0 %v2008
    %2010 = vmatprep.subr.mxu0 0.0
    %v2011 = vand.u32 %v1124, 4294901760
    %2012 = vmatpush1.msra.mxu0 %v2011
    %2013 = vmatprep.subr.mxu0 0.0
    %2014 = vmatpush1.msra.mxu0 0.0
    %2015 = vmatprep.subr.mxu0 0.0
    %2016 = vmatpush1.msra.mxu0 0.0
    %2017 = vmatprep.subr.mxu0 0.0
    %2018 = vmatpush1.msra.mxu0 0.0
    %2019 = vmatprep.subr.mxu0 0.0
    %2020 = vmatpush1.msra.mxu0 0.0
    %2021 = vmatprep.subr.mxu0 0.0
    %2022 = vmatpush1.msra.mxu0 0.0
    %2023 = vmatprep.subr.mxu0 0.0
    %2024 = vmatpush1.msra.mxu0 0.0
    %2025 = vmatprep.subr.mxu0 0.0
    %2026 = vmatpush1.msra.mxu0 0.0
    %2027 = vmatprep.subr.mxu0 0.0
    %2028 = vmatpush1.msra.mxu0 0.0
    %2029 = vmatprep.subr.mxu0 0.0
    %2030 = vmatpush1.msra.mxu0 0.0
    %2031 = vmatprep.subr.mxu0 0.0
    %2032 = vmatpush1.msra.mxu0 0.0
    %2033 = vmatprep.subr.mxu0 0.0
    %2034 = vmatpush1.msra.mxu0 0.0
    %2035 = vmatprep.subr.mxu0 0.0
    %2036 = vmatpush1.msra.mxu0 0.0
    %2037 = vmatprep.subr.mxu0 0.0
    %2038 = vmatpush1.msra.mxu0 0.0
    %2039 = vmatprep.subr.mxu0 0.0
    %2040 = vmatpush1.msra.mxu0 0.0
    %2041 = vmatprep.subr.mxu0 0.0
    %2042 = vmatpush1.msra.mxu0 0.0
    %2043 = vmatprep.subr.mxu0 0.0
    %2044 = vmatpush1.msra.mxu0 0.0
    %2045 = vmatprep.subr.mxu0 0.0
    %2046 = vmatpush1.msra.mxu0 0.0
    %2047 = vmatprep.subr.mxu0 0.0
    %2048 = vmatpush1.msra.mxu0 0.0
    %2049 = vmatprep.subr.mxu0 0.0
    %2050 = vmatpush1.msra.mxu0 0.0
    %2051 = vmatprep.subr.mxu0 0.0
    %2052 = vmatpush1.msra.mxu0 0.0
    %2053 = vmatprep.subr.mxu0 0.0
    %2054 = vmatpush1.msra.mxu0 0.0
    %2055 = vmatprep.subr.mxu0 0.0
    %2056 = vmatpush1.msra.mxu0 0.0
    %2057 = vmatprep.mubr.f32.mxu0 0.0
    %v2058 = vand.u32 %v1139, 4294901760
    %2059 = vmatmul.mubr.f32.gmra.mrb[0].mxu0 %v2058
    %v2060 = vpop.f32.mrb[0].mxu0
    %v2061 = vadd.f32 %v1926, %v2060
    %v2062 = vpop.f32.mrb[0].mxu0
    %2063 = vmatprep.mubr.f32.mxu0 0.0
    %v2064 = vand.u32 %v1142, 4294901760
    %2065 = vmatmul.mubr.f32.gmra.mrb[0].mxu0 %v2064
    %v2066 = vpop.f32.mrb[0].mxu0
    %v2067 = vadd.f32 %v1932, %v2066
    %v2068 = vpop.f32.mrb[0].mxu0
    %2069 = vmatprep.mubr.f32.mxu0 0.0
    %v2070 = vand.u32 %v1145, 4294901760
    %2071 = vmatmul.mubr.f32.gmra.mrb[0].mxu0 %v2070
    %v2072 = vpop.f32.mrb[0].mxu0
    %v2073 = vadd.f32 %v1938, %v2072
    %v2074 = vpop.f32.mrb[0].mxu0
    %2075 = vmatprep.mubr.f32.mxu0 0.0
    %v2076 = vand.u32 %v1148, 4294901760
    %2077 = vmatmul.mubr.f32.gmra.mrb[0].mxu0 %v2076
    %v2078 = vpop.f32.mrb[0].mxu0
    %v2079 = vadd.f32 %v1944, %v2078
    %v2080 = vpop.f32.mrb[0].mxu0
    %2081 = vmatprep.mubr.f32.mxu0 0.0
    %v2082 = vand.u32 %v1151, 4294901760
    %2083 = vmatmul.mubr.f32.gmra.mrb[0].mxu0 %v2082
    %v2084 = vpop.f32.mrb[0].mxu0
    %v2085 = vadd.f32 %v1950, %v2084
    %v2086 = vpop.f32.mrb[0].mxu0
    %2087 = vmatprep.mubr.f32.mxu0 0.0
    %v2088 = vand.u32 %v1154, 4294901760
    %2089 = vmatmul.mubr.f32.gmra.mrb[0].mxu0 %v2088
    %v2090 = vpop.f32.mrb[0].mxu0
    %v2091 = vadd.f32 %v1956, %v2090
    %v2092 = vpop.f32.mrb[0].mxu0
    %2093 = vmatprep.mubr.f32.mxu0 0.0
    %v2094 = vand.u32 %v1157, 4294901760
    %2095 = vmatmul.mubr.f32.gmra.mrb[0].mxu0 %v2094
    %v2096 = vpop.f32.mrb[0].mxu0
    %v2097 = vadd.f32 %v1962, %v2096
    %v2098 = vpop.f32.mrb[0].mxu0
    %2099 = vmatprep.mubr.f32.mxu0 0.0
    %v2100 = vand.u32 %v1160, 4294901760
    %2101 = vmatmul.mubr.f32.gmra.mrb[0].mxu0 %v2100
    %v2102 = vpop.f32.mrb[0].mxu0
    %v2103 = vadd.f32 %v1968, %v2102
    %v2104 = vpop.f32.mrb[0].mxu0
    %2105 = vmatprep.mubr.f32.mxu0 0.0
    %v2106 = vand.u32 %v1163, 4294901760
    %2107 = vmatmul.mubr.f32.gmra.mrb[0].mxu0 %v2106
    %v2108 = vpop.f32.mrb[0].mxu0
    %v2109 = vadd.f32 %v1974, %v2108
    %v2110 = vpop.f32.mrb[0].mxu0
    %2111 = vmatprep.mubr.f32.mxu0 0.0
    %v2112 = vand.u32 %v1166, 4294901760
    %2113 = vmatmul.mubr.f32.gmra.mrb[0].mxu0 %v2112
    %v2114 = vpop.f32.mrb[0].mxu0
    %v2115 = vadd.f32 %v1980, %v2114
    %v2116 = vpop.f32.mrb[0].mxu0
    %2117 = vdwg.mxu0
    %v2118 = vmul.f32 %v2061, %v2061
    %v2119 = vmul.f32 %v2067, %v2067
    %v2120 = vmul.f32 %v2073, %v2073
    %v2121 = vmul.f32 %v2079, %v2079
    %v2122 = vmul.f32 %v2061, %v2073
    %v2123 = vmul.f32 %v2067, %v2079
    %v2124 = vsub.f32 %v2085, %v2118
    %v2125 = vsub.f32 %v2091, %v2119
    %v2126 = vsub.f32 %v2097, %v2120
    %v2127 = vsub.f32 %v2103, %v2121
    %v2128 = vsub.f32 %v2109, %v2122
    %v2129 = vsub.f32 %v2115, %v2123
    %v2130 = vmul.f32 %v2122, 2.0
    %v2131 = vmul.f32 %v2123, 2.0
    %v2132 = vadd.f32 %v2130, 0.0001
    %v2133 = vadd.f32 %v2131, 0.0001
    %v2134 = vmul.f32 %v2128, 2.0
    %v2135 = vmul.f32 %v2129, 2.0
    %v2136 = vadd.f32 %v2134, 0.0009
    %v2137 = vadd.f32 %v2135, 0.0009
    %v2138 = vmul.f32 %v2132, %v2136
    %v2139 = vmul.f32 %v2133, %v2137
    %v2140 = vadd.f32 %v2118, %v2120
    %v2141 = vadd.f32 %v2119, %v2121
    %v2142 = vadd.f32 %v2140, 0.0001
    %v2143 = vadd.f32 %v2141, 0.0001
    %v2144 = vadd.f32 %v2124, %v2126
    %v2145 = vadd.f32 %v2125, %v2127
    %v2146 = vadd.f32 %v2144, 0.0009
    %v2147 = vadd.f32 %v2145, 0.0009
    %v2148 = vmul.f32 %v2142, %v2146
    %v2149 = vmul.f32 %v2143, %v2147
    %v2150 = vrcp.pop %v2148
    %v2151 = vmul.f32 %v2138, %v2150
    %v2152 = vrcp.pop %v2149
    %v2153 = vmul.f32 %v2139, %v2152
    %v2154 = vadd.f32 %v2151, %v2153
    %2155 = vadd.xlane.f32.xlu0 %v2154
    %v2156 = vpop.xlane.xlu0 %2155
    %v2157 = vrot.slane %v2156, 4
    %v2158 = vadd.f32 %v2156, %v2157
    %v2159 = vrot.slane %v2158, 2
    %v2160 = vadd.f32 %v2158, %v2159
    %v2161 = vrot.slane %v2160, 1
    %v2162 = vadd.f32 %v2160, %v2161
    %s2163 = vtos %v2162
    %v2164 = vstv %s2163
    %2165 = vst [vmem:[#allocation10] sm:$0xff] %v2164
    // Predicated region
    $region34: #{tpu_custom_call.1} parent=1 // pred_check
      _
    $region35: #{tpu_custom_call.1} parent=1 // pred_check_branch
      %2167 = sbr.rel (0) target = $region37
    $region36: #{tpu_custom_call.1} parent=1 // pred_region
      %s2169 = ssub.s32 128, 128
      %2170 = vsyncadd [#allocation4], %s2169
      %s2172 = sshll.u32 [#allocation10], 4
      %s2173 = int_to_ptr.vmem [resolvable:$true] %s2172
      %2175 = dma.vmem_to_hbm [thread:$0]  %s2173, 128, %s4, [#allocation4]
    $region37: #{tpu_custom_call.1} parent=1 // pred_fallthru
      _
    // Predicated region
    $region38: #{tpu_custom_call.1} parent=1 // pred_check
      _
    $region39: #{tpu_custom_call.1} parent=1 // pred_check_branch
      %2177 = sbr.rel (0) target = $region41
    $region40: #{tpu_custom_call.1} parent=1 // pred_region
      %2178 = dma.done [#allocation4], 128
    $region41: #{tpu_custom_call.1} parent=1 // pred_fallthru
      _
    %2179 = vsyncpa [#allocation3], 1
    %2180 = vsyncpa [#allocation6], 1
    %2181 = vsyncpa [#allocation9], 1
    %2182 = vsyncpa [#allocation4], 1

</llo_original>
